<compile_context>
chip_gen: v7x
topology: tpu7x:2x2x1
jax: 0.10.0
libtpu: 0.0.40
codegen_flags: <defaults>
</compile_context>

<pallas_src>
import functools

import numpy as np
import jax
import jax.numpy as jnp
from jax import lax
from jax.experimental import pallas as pl
from jax.experimental.pallas import tpu as pltpu


def actor_kernel(act_limit, B, T, H,
                 obs_ref, hist_ref, idx_ref,
                 Wpre_ref, bpre_ref,
                 Wih_ref, Whh_ref, bihh_ref,
                 Wafter_ref, bafter_ref,
                 Wcur_ref, bcur_ref,
                 Wp1_ref, bp1_ref,
                 Wp2_ref, bp2_ref,
                 act_ref, histout_ref,
                 xih_ref):
    f32 = jnp.float32
    bf16 = jnp.bfloat16

    # ---- hoisted batched matmuls (off the serial recurrence path) -----------
    # hist is time-major flattened: row t*B + b == hist_obs[b, t, :].
    hist = hist_ref[...]                                            # (T*B, D) f32
    x = jnp.maximum(
        jnp.dot(hist.astype(bf16), Wpre_ref[...],
                preferred_element_type=f32) + bpre_ref[...], 0.0)   # (T*B, H)
    # Spill the hoisted gate inputs to VMEM scratch so they are NOT held in
    # vregs across the serial recurrence (32 vregs worth of f32 otherwise).
    xih_ref[...] = jnp.dot(x.astype(bf16), Wih_ref[...],
                           preferred_element_type=f32) + bihh_ref[...]  # (T*B, 4H)

    idx = idx_ref[...]                                              # (B, 1) int32

    # LSTM recurrence. Gate order in the (permuted) weights is (i, f, o, g):
    # one fused sigmoid over (B, 3H) and one tanh over (B, H) per step.
    # TODO(synk): hold Whh stationary in the MXU (pltpu.matmul_push_rhs /
    # matmul_acc_lhs / matmul_pop, MRB accumulate on v7x) once validated on
    # hardware — with only B=8 LHS rows the per-step MXU cost is dominated by
    # the repeated 128x512 weight push.
    def step(t, carry):
        h, c, sel = carry
        start = pl.multiple_of(t * B, B)                            # sublane-aligned
        g_in = xih_ref[pl.ds(start, B), :]                          # (B, 4H) from VMEM
        gates = g_in + jnp.dot(h.astype(bf16), Whh_ref[...],
                               preferred_element_type=f32)
        sig = jax.nn.sigmoid(gates[:, :3 * H])                      # i | f | o
        g_g = jnp.tanh(gates[:, 3 * H:])
        i_g = sig[:, :H]
        f_g = sig[:, H:2 * H]
        o_g = sig[:, 2 * H:]
        c_new = f_g * c + i_g * g_g
        h_new = o_g * jnp.tanh(c_new)
        # torch.gather(x, 1, idx): keep hidden state at the requested timestep.
        sel_new = jnp.where(idx == t, h_new, sel)
        return (h_new, c_new, sel_new)

    zeros = jnp.zeros((B, H), f32)
    h, c, sel = lax.fori_loop(0, T, step, (zeros, zeros, zeros), unroll=True)

    # after-LSTM MLP on the gathered timestep (per-timestep Linear+ReLU followed
    # by gather == gather followed by Linear+ReLU).
    hist_out = jnp.maximum(
        jnp.dot(sel.astype(bf16), Wafter_ref[...],
                preferred_element_type=f32) + bafter_ref[...], 0.0)

    # current-observation feature branch.
    cur = jnp.maximum(
        jnp.dot(obs_ref[...].astype(bf16), Wcur_ref[...],
                preferred_element_type=f32) + bcur_ref[...], 0.0)

    # post-combined head: lane-dim concat of two (B, H) tiles is free; a single
    # K=2H matmul fills the MXU contraction depth on v6e/v7x.
    comb = jnp.concatenate([hist_out, cur], axis=-1)                # (B, 2H)
    z = jnp.maximum(
        jnp.dot(comb.astype(bf16), Wp1_ref[...],
                preferred_element_type=f32) + bp1_ref[...], 0.0)
    # Final layer is lane-padded (Wp2/bp2 padded to 128 cols in the wrapper)
    # so this store is a full, unmasked vreg store.
    a = jnp.tanh(
        jnp.dot(z.astype(bf16), Wp2_ref[...], preferred_element_type=f32)
        + bp2_ref[...])

    act_ref[...] = act_limit * a
    histout_ref[...] = hist_out


def mlp_actor_forward(params, obs, hist_obs, hist_seg_len, act_limit):
    B, obs_dim = obs.shape
    _, T, _ = hist_obs.shape
    H = params["Whh"].shape[0]
    act_dim = params["Wp2"].shape[1]
    bf16 = jnp.bfloat16

    # tmp_hist_seg_len[hist_seg_len == 0] = 1 ; gather index = tmp - 1,
    # clamped to the last timestep (matches the reference gather semantics).
    idx = jnp.where(hist_seg_len == 0, 1, hist_seg_len) - 1
    idx = jnp.clip(idx, 0, T - 1).astype(jnp.int32).reshape(B, 1)

    # Time-major flatten so each timestep is a contiguous (B, *) sublane slab
    # inside the kernel (no in-kernel reshape/relayout needed).
    hist2d = jnp.transpose(hist_obs, (1, 0, 2)).reshape(T * B, obs_dim)

    # Permute LSTM gate columns from PyTorch (i, f, g, o) to (i, f, o, g) and
    # fold the two gate biases into one.
    perm = np.concatenate([np.arange(0, 2 * H),
                           np.arange(3 * H, 4 * H),
                           np.arange(2 * H, 3 * H)])
    Wih = params["Wih"][:, perm]
    Whh = params["Whh"][:, perm]
    bihh = (params["bih"] + params["bhh"])[:, perm]

    # Lane-pad the final layer to 128 output columns (unmasked vst); slice back
    # to act_dim outside the kernel.
    Apad = ((act_dim + 127) // 128) * 128
    Wp2p = jnp.zeros((H, Apad), jnp.float32).at[:, :act_dim].set(params["Wp2"])
    bp2p = jnp.zeros((1, Apad), jnp.float32).at[:, :act_dim].set(params["bp2"])

    # Matmul weights in bf16 (halves weight DMA, native bf16 MXU with f32 acc).
    weight_args = (
        params["Wpre"].astype(bf16), params["bpre"],
        Wih.astype(bf16), Whh.astype(bf16), bihh,
        params["Wafter"].astype(bf16), params["bafter"],
        params["Wcur"].astype(bf16), params["bcur"],
        params["Wp1"].astype(bf16), params["bp1"],
        Wp2p.astype(bf16), bp2p,
    )

    n_inputs = 3 + len(weight_args)
    vmem = pl.BlockSpec(memory_space=pltpu.MemorySpace.VMEM)

    # Advisory cost estimate so XLA can overlap surrounding ops with this call.
    flops = int(2 * T * B * (obs_dim * H + 2 * H * 4 * H)
                + 2 * B * (H * H + obs_dim * H + 2 * H * H + H * Apad))
    transcendentals = int(T * B * 5 * H + B * Apad)
    in_bytes = int(sum(a.size * a.dtype.itemsize
                       for a in (obs, hist2d, idx) + weight_args))
    out_bytes = int(B * Apad * 4 + B * H * 4)
    cost = pl.CostEstimate(flops=flops, transcendentals=transcendentals,
                           bytes_accessed=in_bytes + out_bytes)

    # Single block: at B=8 a grid adds ~0.35 us/step of pure overhead; total
    # residency (~0.4 MB weights + 128 KiB xih scratch) is far below scoped
    # VMEM defaults on v5e/v6e/v7x, so no vmem_limit tuning is needed.
    # TODO(synk): for large B (>=128) add a batch grid with
    # dimension_semantics=("parallel",) (batch blocks multiple of 16, weight
    # index_maps -> block 0) so both v7x TensorCores / megacore are used.
    kernel = functools.partial(actor_kernel, float(act_limit), B, T, H)
    act_pad, hist_out = pl.pallas_call(
        kernel,
        out_shape=(jax.ShapeDtypeStruct((B, Apad), jnp.float32),
                   jax.ShapeDtypeStruct((B, H), jnp.float32)),
        in_specs=[vmem] * n_inputs,
        out_specs=(vmem, vmem),
        scratch_shapes=[pltpu.VMEM((T * B, 4 * H), jnp.float32)],
        cost_estimate=cost,
    )(obs, hist2d, idx, *weight_args)

    act = act_pad[:, :act_dim]
    extracted_memory = hist_out
    return act, hist_out, extracted_memory


def init_params(key, obs_dim, act_dim, hidden=128):
    """Deterministic synthetic parameters (PyTorch-style uniform(-1/sqrt(fan_in)))."""
    def linear(k, fan_in, fan_out):
        bound = 1.0 / jnp.sqrt(jnp.float32(fan_in))
        kw, kb = jax.random.split(k)
        W = jax.random.uniform(kw, (fan_in, fan_out), jnp.float32, -bound, bound)
        b = jax.random.uniform(kb, (1, fan_out), jnp.float32, -bound, bound)
        return W, b

    ks = jax.random.split(key, 7)
    p = {}
    p["Wpre"], p["bpre"] = linear(ks[0], obs_dim, hidden)
    p["Wih"], p["bih"] = linear(ks[1], hidden, 4 * hidden)      # LSTM input weights
    p["Whh"], p["bhh"] = linear(ks[2], hidden, 4 * hidden)      # LSTM hidden weights
    p["Wafter"], p["bafter"] = linear(ks[3], hidden, hidden)
    p["Wcur"], p["bcur"] = linear(ks[4], obs_dim, hidden)
    p["Wp1"], p["bp1"] = linear(ks[5], 2 * hidden, hidden)
    p["Wp2"], p["bp2"] = linear(ks[6], hidden, act_dim)
    return p


def reference_forward(params, obs, hist_obs, hist_seg_len, act_limit):
    """Pure-JAX reference mirroring the PyTorch forward (for verification)."""
    B, T, _ = hist_obs.shape
    H = params["Whh"].shape[0]
    x = jnp.maximum(hist_obs @ params["Wpre"] + params["bpre"], 0.0)    # (B,T,H)

    def step(carry, x_t):
        h, c = carry
        g = x_t @ params["Wih"] + params["bih"] + h @ params["Whh"] + params["bhh"]
        i = jax.nn.sigmoid(g[:, :H]); f = jax.nn.sigmoid(g[:, H:2 * H])
        gg = jnp.tanh(g[:, 2 * H:3 * H]); o = jax.nn.sigmoid(g[:, 3 * H:])
        c = f * c + i * gg
        h = o * jnp.tanh(c)
        return (h, c), h

    h0 = jnp.zeros((B, H), jnp.float32)
    (_, _), hs = jax.lax.scan(step, (h0, h0), jnp.transpose(x, (1, 0, 2)))
    hs = jnp.transpose(hs, (1, 0, 2))                                   # (B,T,H)
    hs = jnp.maximum(hs @ params["Wafter"] + params["bafter"], 0.0)
    idx = jnp.clip(jnp.where(hist_seg_len == 0, 1, hist_seg_len) - 1, 0, T - 1)
    hist_out = hs[jnp.arange(B), idx]                                   # (B,H)
    cur = jnp.maximum(obs @ params["Wcur"] + params["bcur"], 0.0)
    comb = jnp.concatenate([hist_out, cur], axis=-1)
    z = jnp.maximum(comb @ params["Wp1"] + params["bp1"], 0.0)
    a = jnp.tanh(z @ params["Wp2"] + params["bp2"])
    return act_limit * a, hist_out, hist_out


if __name__ == "__main__":
    B, T = 8, 8                       # B multiple of 8 -> full f32 sublane use
    obs_dim, act_dim, hidden = 8, 4, 128
    act_limit = 2.0

    key = jax.random.PRNGKey(0)
    k_obs, k_hist, k_par = jax.random.split(key, 3)

    obs = jax.random.normal(k_obs, (B, obs_dim), jnp.float32)
    hist_obs = jax.random.normal(k_hist, (B, T, obs_dim), jnp.float32)
    # includes the ==0 clamp path and the last-timestep (==T) path
    hist_seg_len = jnp.array([5, 0, 8, 1, 3, 7, 2, 6], dtype=jnp.int32)

    params = init_params(k_par, obs_dim, act_dim, hidden)

    act, hist_out, extracted = mlp_actor_forward(params, obs, hist_obs,
                                                 hist_seg_len, act_limit)
    jax.block_until_ready((act, hist_out, extracted))

    # Reference uses the same bf16-rounded weights the kernel consumes (upcast
    # back to f32), so the only remaining delta is the bf16 MXU inputs with f32
    # accumulation inside the kernel.
    ref_params = {k: (v.astype(jnp.bfloat16).astype(jnp.float32)
                      if k.startswith("W") else v) for k, v in params.items()}
    act_ref, hist_ref, _ = reference_forward(ref_params, obs, hist_obs,
                                             hist_seg_len, act_limit)

    assert act.shape == (B, act_dim)
    assert jnp.allclose(act, act_ref, atol=2e-2, rtol=2e-2), \
        float(jnp.max(jnp.abs(act - act_ref)))
    assert jnp.allclose(hist_out, hist_ref, atol=2e-2, rtol=2e-2), \
        float(jnp.max(jnp.abs(hist_out - hist_ref)))
    print("KERNEL_OK")
</pallas_src>

<mosaic_0001>
module attributes {stable_mosaic.version = 11 : i64} {
  func.func @actor_kernel(%arg0: memref<8x8xf32, #tpu.memory_space<vmem>>, %arg1: memref<64x8xf32, #tpu.memory_space<vmem>>, %arg2: memref<8x1xi32, #tpu.memory_space<vmem>>, %arg3: memref<8x128xbf16, #tpu.memory_space<vmem>>, %arg4: memref<1x128xf32, #tpu.memory_space<vmem>>, %arg5: memref<128x512xbf16, #tpu.memory_space<vmem>>, %arg6: memref<128x512xbf16, #tpu.memory_space<vmem>>, %arg7: memref<1x512xf32, #tpu.memory_space<vmem>>, %arg8: memref<128x128xbf16, #tpu.memory_space<vmem>>, %arg9: memref<1x128xf32, #tpu.memory_space<vmem>>, %arg10: memref<8x128xbf16, #tpu.memory_space<vmem>>, %arg11: memref<1x128xf32, #tpu.memory_space<vmem>>, %arg12: memref<256x128xbf16, #tpu.memory_space<vmem>>, %arg13: memref<1x128xf32, #tpu.memory_space<vmem>>, %arg14: memref<128x128xbf16, #tpu.memory_space<vmem>>, %arg15: memref<1x128xf32, #tpu.memory_space<vmem>>, %arg16: memref<8x128xf32, #tpu.memory_space<vmem>>, %arg17: memref<8x128xf32, #tpu.memory_space<vmem>>, %arg18: memref<64x512xf32, #tpu.memory_space<vmem>>) attributes {dimension_semantics = [], scalar_prefetch = 0 : i64, scratch_operands = 1 : i64, tpu.core_type = #tpu.core_type<tc>} {
    %c0 = arith.constant 0 : index
    %c0_0 = arith.constant 0 : index
    %0 = vector.load %arg1[%c0, %c0_0] : memref<64x8xf32, #tpu.memory_space<vmem>>, vector<64x8xf32>
    %1 = arith.truncf %0 : vector<64x8xf32> to vector<64x8xbf16>
    %c0_1 = arith.constant 0 : index
    %c0_2 = arith.constant 0 : index
    %2 = vector.load %arg3[%c0_1, %c0_2] : memref<8x128xbf16, #tpu.memory_space<vmem>>, vector<8x128xbf16>
    %cst = arith.constant dense<0.000000e+00> : vector<64x128xf32>
    %3 = tpu.matmul %1, %2, %cst {dimension_numbers = #tpu.dot_dimension_numbers<[1], [0], [0], [1], [0, 0, 1, 1], [], []>} : vector<64x8xbf16>, vector<8x128xbf16>, vector<64x128xf32> -> vector<64x128xf32>
    %c0_3 = arith.constant 0 : index
    %c0_4 = arith.constant 0 : index
    %4 = vector.load %arg4[%c0_3, %c0_4] : memref<1x128xf32, #tpu.memory_space<vmem>>, vector<1x128xf32>
    %5 = vector.broadcast %4 : vector<1x128xf32> to vector<64x128xf32>
    %6 = arith.addf %3, %5 : vector<64x128xf32>
    %cst_5 = arith.constant 0.000000e+00 : f32
    %7 = vector.broadcast %cst_5 : f32 to vector<64x128xf32>
    %8 = arith.maximumf %6, %7 : vector<64x128xf32>
    %9 = arith.truncf %8 : vector<64x128xf32> to vector<64x128xbf16>
    %c0_6 = arith.constant 0 : index
    %c0_7 = arith.constant 0 : index
    %10 = vector.load %arg5[%c0_6, %c0_7] : memref<128x512xbf16, #tpu.memory_space<vmem>>, vector<128x512xbf16>
    %cst_8 = arith.constant dense<0.000000e+00> : vector<64x512xf32>
    %11 = tpu.matmul %9, %10, %cst_8 {dimension_numbers = #tpu.dot_dimension_numbers<[1], [0], [0], [1], [0, 0, 1, 1], [], []>} : vector<64x128xbf16>, vector<128x512xbf16>, vector<64x512xf32> -> vector<64x512xf32>
    %c0_9 = arith.constant 0 : index
    %c0_10 = arith.constant 0 : index
    %12 = vector.load %arg7[%c0_9, %c0_10] : memref<1x512xf32, #tpu.memory_space<vmem>>, vector<1x512xf32>
    %13 = vector.broadcast %12 : vector<1x512xf32> to vector<64x512xf32>
    %14 = arith.addf %11, %13 : vector<64x512xf32>
    %c0_11 = arith.constant 0 : index
    %c0_12 = arith.constant 0 : index
    %15 = vector.load %arg18[%c0_11, %c0_12] : memref<64x512xf32, #tpu.memory_space<vmem>>, vector<64x512xf32>
    tpu.vector_store %arg18[%c0_11, %c0_12], %14 {strides = array<i32>} : memref<64x512xf32, #tpu.memory_space<vmem>>, vector<64x512xf32>,
    %c0_13 = arith.constant 0 : index
    %c0_14 = arith.constant 0 : index
    %16 = vector.load %arg2[%c0_13, %c0_14] : memref<8x1xi32, #tpu.memory_space<vmem>>, vector<8x1xi32>
    %cst_15 = arith.constant 0.000000e+00 : f32
    %17 = vector.broadcast %cst_15 : f32 to vector<8x128xf32>
    %c0_i32 = arith.constant 0 : i32
    %c8_i32 = arith.constant 8 : i32
    %18 = arith.muli %c0_i32, %c8_i32 : i32
    %19 = tpu.assume_multiple %18, 8 : i32
    %20 = arith.index_cast %19 : i32 to index
    %c0_16 = arith.constant 0 : index
    %21 = vector.load %arg18[%20, %c0_16] : memref<64x512xf32, #tpu.memory_space<vmem>>, vector<8x512xf32>
    %22 = arith.truncf %17 : vector<8x128xf32> to vector<8x128xbf16>
    %c0_17 = arith.constant 0 : index
    %c0_18 = arith.constant 0 : index
    %23 = vector.load %arg6[%c0_17, %c0_18] : memref<128x512xbf16, #tpu.memory_space<vmem>>, vector<128x512xbf16>
    %cst_19 = arith.constant dense<0.000000e+00> : vector<8x512xf32>
    %24 = tpu.matmul %22, %23, %cst_19 {dimension_numbers = #tpu.dot_dimension_numbers<[1], [0], [0], [1], [0, 0, 1, 1], [], []>} : vector<8x128xbf16>, vector<128x512xbf16>, vector<8x512xf32> -> vector<8x512xf32>
    %25 = arith.addf %21, %24 : vector<8x512xf32>
    %26 = vector.extract_strided_slice %25 {offsets = [0, 0], sizes = [8, 384], strides = [1, 1]} : vector<8x512xf32> to vector<8x384xf32>
    %27 = arith.negf %26 : vector<8x384xf32>
    %28 = math.exp %27 : vector<8x384xf32>
    %cst_20 = arith.constant 1.000000e+00 : f32
    %29 = vector.broadcast %cst_20 : f32 to vector<8x384xf32>
    %30 = arith.addf %29, %28 : vector<8x384xf32>
    %31 = arith.divf %29, %30 : vector<8x384xf32>
    %32 = vector.extract_strided_slice %25 {offsets = [0, 384], sizes = [8, 128], strides = [1, 1]} : vector<8x512xf32> to vector<8x128xf32>
    %33 = math.tanh %32 : vector<8x128xf32>
    %34 = vector.extract_strided_slice %31 {offsets = [0, 0], sizes = [8, 128], strides = [1, 1]} : vector<8x384xf32> to vector<8x128xf32>
    %35 = vector.extract_strided_slice %31 {offsets = [0, 128], sizes = [8, 128], strides = [1, 1]} : vector<8x384xf32> to vector<8x128xf32>
    %36 = vector.extract_strided_slice %31 {offsets = [0, 256], sizes = [8, 128], strides = [1, 1]} : vector<8x384xf32> to vector<8x128xf32>
    %37 = arith.mulf %35, %17 : vector<8x128xf32>
    %38 = arith.mulf %34, %33 : vector<8x128xf32>
    %39 = arith.addf %37, %38 : vector<8x128xf32>
    %40 = math.tanh %39 : vector<8x128xf32>
    %41 = arith.mulf %36, %40 : vector<8x128xf32>
    %42 = vector.broadcast %c0_i32 : i32 to vector<8x1xi32>
    %43 = arith.cmpi eq, %16, %42 : vector<8x1xi32>
    %44 = vector.shape_cast %43 : vector<8x1xi1> to vector<8x1xi1>
    %45 = vector.broadcast %44 : vector<8x1xi1> to vector<8x128xi1>
    %46 = arith.select %45, %41, %17 : vector<8x128xi1>, vector<8x128xf32>
    %c1_i32 = arith.constant 1 : i32
    %c8_i32_21 = arith.constant 8 : i32
    %47 = arith.muli %c1_i32, %c8_i32_21 : i32
    %48 = tpu.assume_multiple %47, 8 : i32
    %49 = arith.index_cast %48 : i32 to index
    %c0_22 = arith.constant 0 : index
    %50 = vector.load %arg18[%49, %c0_22] : memref<64x512xf32, #tpu.memory_space<vmem>>, vector<8x512xf32>
    %51 = arith.truncf %41 : vector<8x128xf32> to vector<8x128xbf16>
    %c0_23 = arith.constant 0 : index
    %c0_24 = arith.constant 0 : index
    %52 = vector.load %arg6[%c0_23, %c0_24] : memref<128x512xbf16, #tpu.memory_space<vmem>>, vector<128x512xbf16>
    %cst_25 = arith.constant dense<0.000000e+00> : vector<8x512xf32>
    %53 = tpu.matmul %51, %52, %cst_25 {dimension_numbers = #tpu.dot_dimension_numbers<[1], [0], [0], [1], [0, 0, 1, 1], [], []>} : vector<8x128xbf16>, vector<128x512xbf16>, vector<8x512xf32> -> vector<8x512xf32>
    %54 = arith.addf %50, %53 : vector<8x512xf32>
    %55 = vector.extract_strided_slice %54 {offsets = [0, 0], sizes = [8, 384], strides = [1, 1]} : vector<8x512xf32> to vector<8x384xf32>
    %56 = arith.negf %55 : vector<8x384xf32>
    %57 = math.exp %56 : vector<8x384xf32>
    %cst_26 = arith.constant 1.000000e+00 : f32
    %58 = vector.broadcast %cst_26 : f32 to vector<8x384xf32>
    %59 = arith.addf %58, %57 : vector<8x384xf32>
    %60 = arith.divf %58, %59 : vector<8x384xf32>
    %61 = vector.extract_strided_slice %54 {offsets = [0, 384], sizes = [8, 128], strides = [1, 1]} : vector<8x512xf32> to vector<8x128xf32>
    %62 = math.tanh %61 : vector<8x128xf32>
    %63 = vector.extract_strided_slice %60 {offsets = [0, 0], sizes = [8, 128], strides = [1, 1]} : vector<8x384xf32> to vector<8x128xf32>
    %64 = vector.extract_strided_slice %60 {offsets = [0, 128], sizes = [8, 128], strides = [1, 1]} : vector<8x384xf32> to vector<8x128xf32>
    %65 = vector.extract_strided_slice %60 {offsets = [0, 256], sizes = [8, 128], strides = [1, 1]} : vector<8x384xf32> to vector<8x128xf32>
    %66 = arith.mulf %64, %39 : vector<8x128xf32>
    %67 = arith.mulf %63, %62 : vector<8x128xf32>
    %68 = arith.addf %66, %67 : vector<8x128xf32>
    %69 = math.tanh %68 : vector<8x128xf32>
    %70 = arith.mulf %65, %69 : vector<8x128xf32>
    %71 = vector.broadcast %c1_i32 : i32 to vector<8x1xi32>
    %72 = arith.cmpi eq, %16, %71 : vector<8x1xi32>
    %73 = vector.shape_cast %72 : vector<8x1xi1> to vector<8x1xi1>
    %74 = vector.broadcast %73 : vector<8x1xi1> to vector<8x128xi1>
    %75 = arith.select %74, %70, %46 : vector<8x128xi1>, vector<8x128xf32>
    %c2_i32 = arith.constant 2 : i32
    %c8_i32_27 = arith.constant 8 : i32
    %76 = arith.muli %c2_i32, %c8_i32_27 : i32
    %77 = tpu.assume_multiple %76, 8 : i32
    %78 = arith.index_cast %77 : i32 to index
    %c0_28 = arith.constant 0 : index
    %79 = vector.load %arg18[%78, %c0_28] : memref<64x512xf32, #tpu.memory_space<vmem>>, vector<8x512xf32>
    %80 = arith.truncf %70 : vector<8x128xf32> to vector<8x128xbf16>
    %c0_29 = arith.constant 0 : index
    %c0_30 = arith.constant 0 : index
    %81 = vector.load %arg6[%c0_29, %c0_30] : memref<128x512xbf16, #tpu.memory_space<vmem>>, vector<128x512xbf16>
    %cst_31 = arith.constant dense<0.000000e+00> : vector<8x512xf32>
    %82 = tpu.matmul %80, %81, %cst_31 {dimension_numbers = #tpu.dot_dimension_numbers<[1], [0], [0], [1], [0, 0, 1, 1], [], []>} : vector<8x128xbf16>, vector<128x512xbf16>, vector<8x512xf32> -> vector<8x512xf32>
    %83 = arith.addf %79, %82 : vector<8x512xf32>
    %84 = vector.extract_strided_slice %83 {offsets = [0, 0], sizes = [8, 384], strides = [1, 1]} : vector<8x512xf32> to vector<8x384xf32>
    %85 = arith.negf %84 : vector<8x384xf32>
    %86 = math.exp %85 : vector<8x384xf32>
    %cst_32 = arith.constant 1.000000e+00 : f32
    %87 = vector.broadcast %cst_32 : f32 to vector<8x384xf32>
    %88 = arith.addf %87, %86 : vector<8x384xf32>
    %89 = arith.divf %87, %88 : vector<8x384xf32>
    %90 = vector.extract_strided_slice %83 {offsets = [0, 384], sizes = [8, 128], strides = [1, 1]} : vector<8x512xf32> to vector<8x128xf32>
    %91 = math.tanh %90 : vector<8x128xf32>
    %92 = vector.extract_strided_slice %89 {offsets = [0, 0], sizes = [8, 128], strides = [1, 1]} : vector<8x384xf32> to vector<8x128xf32>
    %93 = vector.extract_strided_slice %89 {offsets = [0, 128], sizes = [8, 128], strides = [1, 1]} : vector<8x384xf32> to vector<8x128xf32>
    %94 = vector.extract_strided_slice %89 {offsets = [0, 256], sizes = [8, 128], strides = [1, 1]} : vector<8x384xf32> to vector<8x128xf32>
    %95 = arith.mulf %93, %68 : vector<8x128xf32>
    %96 = arith.mulf %92, %91 : vector<8x128xf32>
    %97 = arith.addf %95, %96 : vector<8x128xf32>
    %98 = math.tanh %97 : vector<8x128xf32>
    %99 = arith.mulf %94, %98 : vector<8x128xf32>
    %100 = vector.broadcast %c2_i32 : i32 to vector<8x1xi32>
    %101 = arith.cmpi eq, %16, %100 : vector<8x1xi32>
    %102 = vector.shape_cast %101 : vector<8x1xi1> to vector<8x1xi1>
    %103 = vector.broadcast %102 : vector<8x1xi1> to vector<8x128xi1>
    %104 = arith.select %103, %99, %75 : vector<8x128xi1>, vector<8x128xf32>
    %c3_i32 = arith.constant 3 : i32
    %c8_i32_33 = arith.constant 8 : i32
    %105 = arith.muli %c3_i32, %c8_i32_33 : i32
    %106 = tpu.assume_multiple %105, 8 : i32
    %107 = arith.index_cast %106 : i32 to index
    %c0_34 = arith.constant 0 : index
    %108 = vector.load %arg18[%107, %c0_34] : memref<64x512xf32, #tpu.memory_space<vmem>>, vector<8x512xf32>
    %109 = arith.truncf %99 : vector<8x128xf32> to vector<8x128xbf16>
    %c0_35 = arith.constant 0 : index
    %c0_36 = arith.constant 0 : index
    %110 = vector.load %arg6[%c0_35, %c0_36] : memref<128x512xbf16, #tpu.memory_space<vmem>>, vector<128x512xbf16>
    %cst_37 = arith.constant dense<0.000000e+00> : vector<8x512xf32>
    %111 = tpu.matmul %109, %110, %cst_37 {dimension_numbers = #tpu.dot_dimension_numbers<[1], [0], [0], [1], [0, 0, 1, 1], [], []>} : vector<8x128xbf16>, vector<128x512xbf16>, vector<8x512xf32> -> vector<8x512xf32>
    %112 = arith.addf %108, %111 : vector<8x512xf32>
    %113 = vector.extract_strided_slice %112 {offsets = [0, 0], sizes = [8, 384], strides = [1, 1]} : vector<8x512xf32> to vector<8x384xf32>
    %114 = arith.negf %113 : vector<8x384xf32>
    %115 = math.exp %114 : vector<8x384xf32>
    %cst_38 = arith.constant 1.000000e+00 : f32
    %116 = vector.broadcast %cst_38 : f32 to vector<8x384xf32>
    %117 = arith.addf %116, %115 : vector<8x384xf32>
    %118 = arith.divf %116, %117 : vector<8x384xf32>
    %119 = vector.extract_strided_slice %112 {offsets = [0, 384], sizes = [8, 128], strides = [1, 1]} : vector<8x512xf32> to vector<8x128xf32>
    %120 = math.tanh %119 : vector<8x128xf32>
    %121 = vector.extract_strided_slice %118 {offsets = [0, 0], sizes = [8, 128], strides = [1, 1]} : vector<8x384xf32> to vector<8x128xf32>
    %122 = vector.extract_strided_slice %118 {offsets = [0, 128], sizes = [8, 128], strides = [1, 1]} : vector<8x384xf32> to vector<8x128xf32>
    %123 = vector.extract_strided_slice %118 {offsets = [0, 256], sizes = [8, 128], strides = [1, 1]} : vector<8x384xf32> to vector<8x128xf32>
    %124 = arith.mulf %122, %97 : vector<8x128xf32>
    %125 = arith.mulf %121, %120 : vector<8x128xf32>
    %126 = arith.addf %124, %125 : vector<8x128xf32>
    %127 = math.tanh %126 : vector<8x128xf32>
    %128 = arith.mulf %123, %127 : vector<8x128xf32>
    %129 = vector.broadcast %c3_i32 : i32 to vector<8x1xi32>
    %130 = arith.cmpi eq, %16, %129 : vector<8x1xi32>
    %131 = vector.shape_cast %130 : vector<8x1xi1> to vector<8x1xi1>
    %132 = vector.broadcast %131 : vector<8x1xi1> to vector<8x128xi1>
    %133 = arith.select %132, %128, %104 : vector<8x128xi1>, vector<8x128xf32>
    %c4_i32 = arith.constant 4 : i32
    %c8_i32_39 = arith.constant 8 : i32
    %134 = arith.muli %c4_i32, %c8_i32_39 : i32
    %135 = tpu.assume_multiple %134, 8 : i32
    %136 = arith.index_cast %135 : i32 to index
    %c0_40 = arith.constant 0 : index
    %137 = vector.load %arg18[%136, %c0_40] : memref<64x512xf32, #tpu.memory_space<vmem>>, vector<8x512xf32>
    %138 = arith.truncf %128 : vector<8x128xf32> to vector<8x128xbf16>
    %c0_41 = arith.constant 0 : index
    %c0_42 = arith.constant 0 : index
    %139 = vector.load %arg6[%c0_41, %c0_42] : memref<128x512xbf16, #tpu.memory_space<vmem>>, vector<128x512xbf16>
    %cst_43 = arith.constant dense<0.000000e+00> : vector<8x512xf32>
    %140 = tpu.matmul %138, %139, %cst_43 {dimension_numbers = #tpu.dot_dimension_numbers<[1], [0], [0], [1], [0, 0, 1, 1], [], []>} : vector<8x128xbf16>, vector<128x512xbf16>, vector<8x512xf32> -> vector<8x512xf32>
    %141 = arith.addf %137, %140 : vector<8x512xf32>
    %142 = vector.extract_strided_slice %141 {offsets = [0, 0], sizes = [8, 384], strides = [1, 1]} : vector<8x512xf32> to vector<8x384xf32>
    %143 = arith.negf %142 : vector<8x384xf32>
    %144 = math.exp %143 : vector<8x384xf32>
    %cst_44 = arith.constant 1.000000e+00 : f32
    %145 = vector.broadcast %cst_44 : f32 to vector<8x384xf32>
    %146 = arith.addf %145, %144 : vector<8x384xf32>
    %147 = arith.divf %145, %146 : vector<8x384xf32>
    %148 = vector.extract_strided_slice %141 {offsets = [0, 384], sizes = [8, 128], strides = [1, 1]} : vector<8x512xf32> to vector<8x128xf32>
    %149 = math.tanh %148 : vector<8x128xf32>
    %150 = vector.extract_strided_slice %147 {offsets = [0, 0], sizes = [8, 128], strides = [1, 1]} : vector<8x384xf32> to vector<8x128xf32>
    %151 = vector.extract_strided_slice %147 {offsets = [0, 128], sizes = [8, 128], strides = [1, 1]} : vector<8x384xf32> to vector<8x128xf32>
    %152 = vector.extract_strided_slice %147 {offsets = [0, 256], sizes = [8, 128], strides = [1, 1]} : vector<8x384xf32> to vector<8x128xf32>
    %153 = arith.mulf %151, %126 : vector<8x128xf32>
    %154 = arith.mulf %150, %149 : vector<8x128xf32>
    %155 = arith.addf %153, %154 : vector<8x128xf32>
    %156 = math.tanh %155 : vector<8x128xf32>
    %157 = arith.mulf %152, %156 : vector<8x128xf32>
    %158 = vector.broadcast %c4_i32 : i32 to vector<8x1xi32>
    %159 = arith.cmpi eq, %16, %158 : vector<8x1xi32>
    %160 = vector.shape_cast %159 : vector<8x1xi1> to vector<8x1xi1>
    %161 = vector.broadcast %160 : vector<8x1xi1> to vector<8x128xi1>
    %162 = arith.select %161, %157, %133 : vector<8x128xi1>, vector<8x128xf32>
    %c5_i32 = arith.constant 5 : i32
    %c8_i32_45 = arith.constant 8 : i32
    %163 = arith.muli %c5_i32, %c8_i32_45 : i32
    %164 = tpu.assume_multiple %163, 8 : i32
    %165 = arith.index_cast %164 : i32 to index
    %c0_46 = arith.constant 0 : index
    %166 = vector.load %arg18[%165, %c0_46] : memref<64x512xf32, #tpu.memory_space<vmem>>, vector<8x512xf32>
    %167 = arith.truncf %157 : vector<8x128xf32> to vector<8x128xbf16>
    %c0_47 = arith.constant 0 : index
    %c0_48 = arith.constant 0 : index
    %168 = vector.load %arg6[%c0_47, %c0_48] : memref<128x512xbf16, #tpu.memory_space<vmem>>, vector<128x512xbf16>
    %cst_49 = arith.constant dense<0.000000e+00> : vector<8x512xf32>
    %169 = tpu.matmul %167, %168, %cst_49 {dimension_numbers = #tpu.dot_dimension_numbers<[1], [0], [0], [1], [0, 0, 1, 1], [], []>} : vector<8x128xbf16>, vector<128x512xbf16>, vector<8x512xf32> -> vector<8x512xf32>
    %170 = arith.addf %166, %169 : vector<8x512xf32>
    %171 = vector.extract_strided_slice %170 {offsets = [0, 0], sizes = [8, 384], strides = [1, 1]} : vector<8x512xf32> to vector<8x384xf32>
    %172 = arith.negf %171 : vector<8x384xf32>
    %173 = math.exp %172 : vector<8x384xf32>
    %cst_50 = arith.constant 1.000000e+00 : f32
    %174 = vector.broadcast %cst_50 : f32 to vector<8x384xf32>
    %175 = arith.addf %174, %173 : vector<8x384xf32>
    %176 = arith.divf %174, %175 : vector<8x384xf32>
    %177 = vector.extract_strided_slice %170 {offsets = [0, 384], sizes = [8, 128], strides = [1, 1]} : vector<8x512xf32> to vector<8x128xf32>
    %178 = math.tanh %177 : vector<8x128xf32>
    %179 = vector.extract_strided_slice %176 {offsets = [0, 0], sizes = [8, 128], strides = [1, 1]} : vector<8x384xf32> to vector<8x128xf32>
    %180 = vector.extract_strided_slice %176 {offsets = [0, 128], sizes = [8, 128], strides = [1, 1]} : vector<8x384xf32> to vector<8x128xf32>
    %181 = vector.extract_strided_slice %176 {offsets = [0, 256], sizes = [8, 128], strides = [1, 1]} : vector<8x384xf32> to vector<8x128xf32>
    %182 = arith.mulf %180, %155 : vector<8x128xf32>
    %183 = arith.mulf %179, %178 : vector<8x128xf32>
    %184 = arith.addf %182, %183 : vector<8x128xf32>
    %185 = math.tanh %184 : vector<8x128xf32>
    %186 = arith.mulf %181, %185 : vector<8x128xf32>
    %187 = vector.broadcast %c5_i32 : i32 to vector<8x1xi32>
    %188 = arith.cmpi eq, %16, %187 : vector<8x1xi32>
    %189 = vector.shape_cast %188 : vector<8x1xi1> to vector<8x1xi1>
    %190 = vector.broadcast %189 : vector<8x1xi1> to vector<8x128xi1>
    %191 = arith.select %190, %186, %162 : vector<8x128xi1>, vector<8x128xf32>
    %c6_i32 = arith.constant 6 : i32
    %c8_i32_51 = arith.constant 8 : i32
    %192 = arith.muli %c6_i32, %c8_i32_51 : i32
    %193 = tpu.assume_multiple %192, 8 : i32
    %194 = arith.index_cast %193 : i32 to index
    %c0_52 = arith.constant 0 : index
    %195 = vector.load %arg18[%194, %c0_52] : memref<64x512xf32, #tpu.memory_space<vmem>>, vector<8x512xf32>
    %196 = arith.truncf %186 : vector<8x128xf32> to vector<8x128xbf16>
    %c0_53 = arith.constant 0 : index
    %c0_54 = arith.constant 0 : index
    %197 = vector.load %arg6[%c0_53, %c0_54] : memref<128x512xbf16, #tpu.memory_space<vmem>>, vector<128x512xbf16>
    %cst_55 = arith.constant dense<0.000000e+00> : vector<8x512xf32>
    %198 = tpu.matmul %196, %197, %cst_55 {dimension_numbers = #tpu.dot_dimension_numbers<[1], [0], [0], [1], [0, 0, 1, 1], [], []>} : vector<8x128xbf16>, vector<128x512xbf16>, vector<8x512xf32> -> vector<8x512xf32>
    %199 = arith.addf %195, %198 : vector<8x512xf32>
    %200 = vector.extract_strided_slice %199 {offsets = [0, 0], sizes = [8, 384], strides = [1, 1]} : vector<8x512xf32> to vector<8x384xf32>
    %201 = arith.negf %200 : vector<8x384xf32>
    %202 = math.exp %201 : vector<8x384xf32>
    %cst_56 = arith.constant 1.000000e+00 : f32
    %203 = vector.broadcast %cst_56 : f32 to vector<8x384xf32>
    %204 = arith.addf %203, %202 : vector<8x384xf32>
    %205 = arith.divf %203, %204 : vector<8x384xf32>
    %206 = vector.extract_strided_slice %199 {offsets = [0, 384], sizes = [8, 128], strides = [1, 1]} : vector<8x512xf32> to vector<8x128xf32>
    %207 = math.tanh %206 : vector<8x128xf32>
    %208 = vector.extract_strided_slice %205 {offsets = [0, 0], sizes = [8, 128], strides = [1, 1]} : vector<8x384xf32> to vector<8x128xf32>
    %209 = vector.extract_strided_slice %205 {offsets = [0, 128], sizes = [8, 128], strides = [1, 1]} : vector<8x384xf32> to vector<8x128xf32>
    %210 = vector.extract_strided_slice %205 {offsets = [0, 256], sizes = [8, 128], strides = [1, 1]} : vector<8x384xf32> to vector<8x128xf32>
    %211 = arith.mulf %209, %184 : vector<8x128xf32>
    %212 = arith.mulf %208, %207 : vector<8x128xf32>
    %213 = arith.addf %211, %212 : vector<8x128xf32>
    %214 = math.tanh %213 : vector<8x128xf32>
    %215 = arith.mulf %210, %214 : vector<8x128xf32>
    %216 = vector.broadcast %c6_i32 : i32 to vector<8x1xi32>
    %217 = arith.cmpi eq, %16, %216 : vector<8x1xi32>
    %218 = vector.shape_cast %217 : vector<8x1xi1> to vector<8x1xi1>
    %219 = vector.broadcast %218 : vector<8x1xi1> to vector<8x128xi1>
    %220 = arith.select %219, %215, %191 : vector<8x128xi1>, vector<8x128xf32>
    %c7_i32 = arith.constant 7 : i32
    %c8_i32_57 = arith.constant 8 : i32
    %221 = arith.muli %c7_i32, %c8_i32_57 : i32
    %222 = tpu.assume_multiple %221, 8 : i32
    %223 = arith.index_cast %222 : i32 to index
    %c0_58 = arith.constant 0 : index
    %224 = vector.load %arg18[%223, %c0_58] : memref<64x512xf32, #tpu.memory_space<vmem>>, vector<8x512xf32>
    %225 = arith.truncf %215 : vector<8x128xf32> to vector<8x128xbf16>
    %c0_59 = arith.constant 0 : index
    %c0_60 = arith.constant 0 : index
    %226 = vector.load %arg6[%c0_59, %c0_60] : memref<128x512xbf16, #tpu.memory_space<vmem>>, vector<128x512xbf16>
    %cst_61 = arith.constant dense<0.000000e+00> : vector<8x512xf32>
    %227 = tpu.matmul %225, %226, %cst_61 {dimension_numbers = #tpu.dot_dimension_numbers<[1], [0], [0], [1], [0, 0, 1, 1], [], []>} : vector<8x128xbf16>, vector<128x512xbf16>, vector<8x512xf32> -> vector<8x512xf32>
    %228 = arith.addf %224, %227 : vector<8x512xf32>
    %229 = vector.extract_strided_slice %228 {offsets = [0, 0], sizes = [8, 384], strides = [1, 1]} : vector<8x512xf32> to vector<8x384xf32>
    %230 = arith.negf %229 : vector<8x384xf32>
    %231 = math.exp %230 : vector<8x384xf32>
    %cst_62 = arith.constant 1.000000e+00 : f32
    %232 = vector.broadcast %cst_62 : f32 to vector<8x384xf32>
    %233 = arith.addf %232, %231 : vector<8x384xf32>
    %234 = arith.divf %232, %233 : vector<8x384xf32>
    %235 = vector.extract_strided_slice %228 {offsets = [0, 384], sizes = [8, 128], strides = [1, 1]} : vector<8x512xf32> to vector<8x128xf32>
    %236 = math.tanh %235 : vector<8x128xf32>
    %237 = vector.extract_strided_slice %234 {offsets = [0, 0], sizes = [8, 128], strides = [1, 1]} : vector<8x384xf32> to vector<8x128xf32>
    %238 = vector.extract_strided_slice %234 {offsets = [0, 128], sizes = [8, 128], strides = [1, 1]} : vector<8x384xf32> to vector<8x128xf32>
    %239 = vector.extract_strided_slice %234 {offsets = [0, 256], sizes = [8, 128], strides = [1, 1]} : vector<8x384xf32> to vector<8x128xf32>
    %240 = arith.mulf %238, %213 : vector<8x128xf32>
    %241 = arith.mulf %237, %236 : vector<8x128xf32>
    %242 = arith.addf %240, %241 : vector<8x128xf32>
    %243 = math.tanh %242 : vector<8x128xf32>
    %244 = arith.mulf %239, %243 : vector<8x128xf32>
    %245 = vector.broadcast %c7_i32 : i32 to vector<8x1xi32>
    %246 = arith.cmpi eq, %16, %245 : vector<8x1xi32>
    %247 = vector.shape_cast %246 : vector<8x1xi1> to vector<8x1xi1>
    %248 = vector.broadcast %247 : vector<8x1xi1> to vector<8x128xi1>
    %249 = arith.select %248, %244, %220 : vector<8x128xi1>, vector<8x128xf32>
    %c8_i32_63 = arith.constant 8 : i32
    %250 = arith.truncf %249 : vector<8x128xf32> to vector<8x128xbf16>
    %c0_64 = arith.constant 0 : index
    %c0_65 = arith.constant 0 : index
    %251 = vector.load %arg8[%c0_64, %c0_65] : memref<128x128xbf16, #tpu.memory_space<vmem>>, vector<128x128xbf16>
    %cst_66 = arith.constant dense<0.000000e+00> : vector<8x128xf32>
    %252 = tpu.matmul %250, %251, %cst_66 {dimension_numbers = #tpu.dot_dimension_numbers<[1], [0], [0], [1], [0, 0, 1, 1], [], []>} : vector<8x128xbf16>, vector<128x128xbf16>, vector<8x128xf32> -> vector<8x128xf32>
    %c0_67 = arith.constant 0 : index
    %c0_68 = arith.constant 0 : index
    %253 = vector.load %arg9[%c0_67, %c0_68] : memref<1x128xf32, #tpu.memory_space<vmem>>, vector<1x128xf32>
    %254 = vector.broadcast %253 : vector<1x128xf32> to vector<8x128xf32>
    %255 = arith.addf %252, %254 : vector<8x128xf32>
    %cst_69 = arith.constant 0.000000e+00 : f32
    %256 = vector.broadcast %cst_69 : f32 to vector<8x128xf32>
    %257 = arith.maximumf %255, %256 : vector<8x128xf32>
    %c0_70 = arith.constant 0 : index
    %c0_71 = arith.constant 0 : index
    %258 = vector.load %arg0[%c0_70, %c0_71] : memref<8x8xf32, #tpu.memory_space<vmem>>, vector<8x8xf32>
    %259 = arith.truncf %258 : vector<8x8xf32> to vector<8x8xbf16>
    %c0_72 = arith.constant 0 : index
    %c0_73 = arith.constant 0 : index
    %260 = vector.load %arg10[%c0_72, %c0_73] : memref<8x128xbf16, #tpu.memory_space<vmem>>, vector<8x128xbf16>
    %cst_74 = arith.constant dense<0.000000e+00> : vector<8x128xf32>
    %261 = tpu.matmul %259, %260, %cst_74 {dimension_numbers = #tpu.dot_dimension_numbers<[1], [0], [0], [1], [0, 0, 1, 1], [], []>} : vector<8x8xbf16>, vector<8x128xbf16>, vector<8x128xf32> -> vector<8x128xf32>
    %c0_75 = arith.constant 0 : index
    %c0_76 = arith.constant 0 : index
    %262 = vector.load %arg11[%c0_75, %c0_76] : memref<1x128xf32, #tpu.memory_space<vmem>>, vector<1x128xf32>
    %263 = vector.broadcast %262 : vector<1x128xf32> to vector<8x128xf32>
    %264 = arith.addf %261, %263 : vector<8x128xf32>
    %cst_77 = arith.constant 0.000000e+00 : f32
    %265 = vector.broadcast %cst_77 : f32 to vector<8x128xf32>
    %266 = arith.maximumf %264, %265 : vector<8x128xf32>
    %267 = tpu.concatenate %257, %266 in 1 : vector<8x128xf32>, vector<8x128xf32> -> vector<8x256xf32>
    %268 = arith.truncf %267 : vector<8x256xf32> to vector<8x256xbf16>
    %c0_78 = arith.constant 0 : index
    %c0_79 = arith.constant 0 : index
    %269 = vector.load %arg12[%c0_78, %c0_79] : memref<256x128xbf16, #tpu.memory_space<vmem>>, vector<256x128xbf16>
    %cst_80 = arith.constant dense<0.000000e+00> : vector<8x128xf32>
    %270 = tpu.matmul %268, %269, %cst_80 {dimension_numbers = #tpu.dot_dimension_numbers<[1], [0], [0], [1], [0, 0, 1, 1], [], []>} : vector<8x256xbf16>, vector<256x128xbf16>, vector<8x128xf32> -> vector<8x128xf32>
    %c0_81 = arith.constant 0 : index
    %c0_82 = arith.constant 0 : index
    %271 = vector.load %arg13[%c0_81, %c0_82] : memref<1x128xf32, #tpu.memory_space<vmem>>, vector<1x128xf32>
    %272 = vector.broadcast %271 : vector<1x128xf32> to vector<8x128xf32>
    %273 = arith.addf %270, %272 : vector<8x128xf32>
    %cst_83 = arith.constant 0.000000e+00 : f32
    %274 = vector.broadcast %cst_83 : f32 to vector<8x128xf32>
    %275 = arith.maximumf %273, %274 : vector<8x128xf32>
    %276 = arith.truncf %275 : vector<8x128xf32> to vector<8x128xbf16>
    %c0_84 = arith.constant 0 : index
    %c0_85 = arith.constant 0 : index
    %277 = vector.load %arg14[%c0_84, %c0_85] : memref<128x128xbf16, #tpu.memory_space<vmem>>, vector<128x128xbf16>
    %cst_86 = arith.constant dense<0.000000e+00> : vector<8x128xf32>
    %278 = tpu.matmul %276, %277, %cst_86 {dimension_numbers = #tpu.dot_dimension_numbers<[1], [0], [0], [1], [0, 0, 1, 1], [], []>} : vector<8x128xbf16>, vector<128x128xbf16>, vector<8x128xf32> -> vector<8x128xf32>
    %c0_87 = arith.constant 0 : index
    %c0_88 = arith.constant 0 : index
    %279 = vector.load %arg15[%c0_87, %c0_88] : memref<1x128xf32, #tpu.memory_space<vmem>>, vector<1x128xf32>
    %280 = vector.broadcast %279 : vector<1x128xf32> to vector<8x128xf32>
    %281 = arith.addf %278, %280 : vector<8x128xf32>
    %282 = math.tanh %281 : vector<8x128xf32>
    %cst_89 = arith.constant 2.000000e+00 : f32
    %283 = vector.broadcast %cst_89 : f32 to vector<8x128xf32>
    %284 = arith.mulf %283, %282 : vector<8x128xf32>
    %c0_90 = arith.constant 0 : index
    %c0_91 = arith.constant 0 : index
    %285 = vector.load %arg16[%c0_90, %c0_91] : memref<8x128xf32, #tpu.memory_space<vmem>>, vector<8x128xf32>
    tpu.vector_store %arg16[%c0_90, %c0_91], %284 {strides = array<i32>} : memref<8x128xf32, #tpu.memory_space<vmem>>, vector<8x128xf32>,
    %c0_92 = arith.constant 0 : index
    %c0_93 = arith.constant 0 : index
    %286 = vector.load %arg17[%c0_92, %c0_93] : memref<8x128xf32, #tpu.memory_space<vmem>>, vector<8x128xf32>
    tpu.vector_store %arg17[%c0_92, %c0_93], %257 {strides = array<i32>} : memref<8x128xf32, #tpu.memory_space<vmem>>, vector<8x128xf32>,
    return
  }
}

</mosaic_0001>

<llo_original>
// kernel: tpu_custom_call.1
$region0: #{tpu_custom_call.1}
  #allocation0 [shape = 'u32[]', space=smem, size = 0x4, offset = 0x4, fixed_abs, tag = 'smem constant byte address 0x4 - core index']
  #allocation1 [shape = 'u32[144,128]{1,0:T(1,128)}', space=vmem, size = 0x12000, scoped, tag = 'internal scratch']
  #allocation2 [shape = 'f32[64,512]{1,0:T(8,128)}', space=vmem, size = 0x20000, scoped, tag = 'scratch operand']
  %s0 = inlined_call_operand.hbm [shape: f32[8,8], index: 0, kind: input, shape index: {}]
  %s1 = inlined_call_operand.vmem [shape: f32[64,8], index: 1, kind: input, shape index: {}]
  %s2 = inlined_call_operand.vmem [shape: s32[8,1], index: 2, kind: input, shape index: {}]
  %s3 = inlined_call_operand.hbm [shape: bf16[8,128], index: 3, kind: input, shape index: {}]
  %s4 = inlined_call_operand.vmem [shape: f32[1,128], index: 4, kind: input, shape index: {}]
  %s5 = inlined_call_operand.hbm [shape: bf16[128,512], index: 5, kind: input, shape index: {}]
  %s6 = inlined_call_operand.hbm [shape: bf16[128,512], index: 6, kind: input, shape index: {}]
  %s7 = inlined_call_operand.hbm [shape: f32[1,512], index: 7, kind: input, shape index: {}]
  %s8 = inlined_call_operand.vmem [shape: bf16[128,128], index: 8, kind: input, shape index: {}]
  %s9 = inlined_call_operand.vmem [shape: f32[1,128], index: 9, kind: input, shape index: {}]
  %s10 = inlined_call_operand.hbm [shape: bf16[8,128], index: 10, kind: input, shape index: {}]
  %s11 = inlined_call_operand.hbm [shape: f32[1,128], index: 11, kind: input, shape index: {}]
  %s12 = inlined_call_operand.hbm [shape: bf16[256,128], index: 12, kind: input, shape index: {}]
  %s13 = inlined_call_operand.hbm [shape: f32[1,128], index: 13, kind: input, shape index: {}]
  %s14 = inlined_call_operand.vmem [shape: bf16[128,128], index: 14, kind: input, shape index: {}]
  %s15 = inlined_call_operand.vmem [shape: f32[1,128], index: 15, kind: input, shape index: {}]
  %s16 = inlined_call_operand.hbm [shape: f32[8,128], index: 16, kind: output, shape index: {0}]
  %s17 = inlined_call_operand.hbm [shape: f32[8,128], index: 17, kind: output, shape index: {1}]
  %18 = xla_tuple %s16, %s17
  %s19 = sld [smem:[#allocation0]]
  $region118: #{tpu_custom_call.1} parent=0
    _
  %s21 = ssub.s32 1, %s19
  %s22 = scalar_select 0, %s21, %s19
  $region1: #{tpu_custom_call.1} parent=0
    #allocation3 [shape = 'u8[4096]{0}', space=vmem, size = 0x1000, scoped, tag = 'input window, operand 0, single buffered']
    #allocation4 [shape = 's32[1]{0}', space=sflag, size = 0x4, scoped, tag = 'scoped memory for tpu_custom_call.1']
    #allocation5 [shape = 's32[1]{0}', space=sflag, size = 0x4, scoped, tag = 'scoped memory for tpu_custom_call.1']
    #allocation6 [shape = 'u8[2048]{0}', space=vmem, size = 0x800, scoped, tag = 'input window, operand 3, single buffered']
    #allocation7 [shape = 's32[1]{0}', space=sflag, size = 0x4, scoped, tag = 'scoped memory for tpu_custom_call.1']
    #allocation8 [shape = 'u8[131072]{0}', space=vmem, size = 0x20000, scoped, tag = 'input window, operand 5, single buffered']
    #allocation9 [shape = 'u8[131072]{0}', space=vmem, size = 0x20000, scoped, tag = 'input window, operand 6, single buffered']
    #allocation10 [shape = 's32[1]{0}', space=sflag, size = 0x4, scoped, tag = 'scoped memory for tpu_custom_call.1']
    #allocation11 [shape = 'u8[2048]{0}', space=vmem, size = 0x800, scoped, tag = 'input window, operand 7, single buffered']
    #allocation12 [shape = 'u8[2048]{0}', space=vmem, size = 0x800, scoped, tag = 'input window, operand 10, single buffered']
    #allocation13 [shape = 's32[1]{0}', space=sflag, size = 0x4, scoped, tag = 'scoped memory for tpu_custom_call.1']
    #allocation14 [shape = 'u8[512]{0}', space=vmem, size = 0x400, scoped, tag = 'input window, operand 11, single buffered']
    #allocation15 [shape = 'u8[65536]{0}', space=vmem, size = 0x10000, scoped, tag = 'input window, operand 12, single buffered']
    #allocation16 [shape = 's32[1]{0}', space=sflag, size = 0x4, scoped, tag = 'scoped memory for tpu_custom_call.1']
    #allocation17 [shape = 'u8[512]{0}', space=vmem, size = 0x400, scoped, tag = 'input window, operand 13, single buffered']
    #allocation18 [shape = 'u8[4096]{0}', space=vmem, size = 0x1000, scoped, tag = 'output window, operand 0, single buffered']
    #allocation19 [shape = 'u8[4096]{0}', space=vmem, size = 0x1000, scoped, tag = 'output window, operand 1, single buffered']
    #allocation20 [shape = 's32[1]{0}', space=sflag, size = 0x4, scoped, tag = 'scoped memory for tpu_custom_call.1']
    %23 = vsyncpa [#allocation4], 0
    %24 = vsyncpa [#allocation7], 0
    %25 = vsyncpa [#allocation10], 0
    %26 = vsyncpa [#allocation13], 0
    %27 = vsyncpa [#allocation16], 0
    %28 = vsyncpa [#allocation5], 0
    %29 = vsyncpa [#allocation20], 0
    // Predicated region
    $region2: #{tpu_custom_call.1} parent=1 // pred_check
      _
    $region3: #{tpu_custom_call.1} parent=1 // pred_check_branch
      %31 = sbr.rel (0) target = $region5
    $region4: #{tpu_custom_call.1} parent=1 // pred_region
      %s33 = ssub.s32 128, 128
      %34 = vsyncadd [#allocation4], %s33
      %s36 = sshll.u32 [#allocation3], 4
      %s37 = int_to_ptr.vmem [resolvable:$true] %s36
      %39 = dma.hbm_to_vmem [thread:$0]  %s0, 128, %s37, [#allocation4]
    $region5: #{tpu_custom_call.1} parent=1 // pred_fallthru
      _
    // Predicated region
    $region6: #{tpu_custom_call.1} parent=1 // pred_check
      _
    $region7: #{tpu_custom_call.1} parent=1 // pred_check_branch
      %41 = sbr.rel (0) target = $region9
    $region8: #{tpu_custom_call.1} parent=1 // pred_region
      _
    $region9: #{tpu_custom_call.1} parent=1 // pred_fallthru
      _
    // Predicated region
    $region10: #{tpu_custom_call.1} parent=1 // pred_check
      _
    $region11: #{tpu_custom_call.1} parent=1 // pred_check_branch
      %43 = sbr.rel (0) target = $region13
    $region12: #{tpu_custom_call.1} parent=1 // pred_region
      _
    $region13: #{tpu_custom_call.1} parent=1 // pred_fallthru
      _
    // Predicated region
    $region14: #{tpu_custom_call.1} parent=1 // pred_check
      _
    $region15: #{tpu_custom_call.1} parent=1 // pred_check_branch
      %45 = sbr.rel (0) target = $region17
    $region16: #{tpu_custom_call.1} parent=1 // pred_region
      %s47 = ssub.s32 64, 64
      %48 = vsyncadd [#allocation7], %s47
      %s50 = sshll.u32 [#allocation6], 4
      %s51 = int_to_ptr.vmem [resolvable:$true] %s50
      %53 = dma.hbm_to_vmem [thread:$0]  %s3, 64, %s51, [#allocation7]
    $region17: #{tpu_custom_call.1} parent=1 // pred_fallthru
      _
    // Predicated region
    $region18: #{tpu_custom_call.1} parent=1 // pred_check
      _
    $region19: #{tpu_custom_call.1} parent=1 // pred_check_branch
      %55 = sbr.rel (0) target = $region21
    $region20: #{tpu_custom_call.1} parent=1 // pred_region
      _
    $region21: #{tpu_custom_call.1} parent=1 // pred_fallthru
      _
    // Predicated region
    $region22: #{tpu_custom_call.1} parent=1 // pred_check
      _
    $region23: #{tpu_custom_call.1} parent=1 // pred_check_branch
      %57 = sbr.rel (0) target = $region25
    $region24: #{tpu_custom_call.1} parent=1 // pred_region
      %s59 = ssub.s32 4096, 4096
      %60 = vsyncadd [#allocation7], %s59
      %s61 = sshll.u32 [#allocation8], 4
      %s62 = int_to_ptr.vmem [resolvable:$true] %s61
      %67 = dma.hbm_to_vmem [thread:$0]  %s5, 4096, %s62, [#allocation7], 256, 256, 16
    $region25: #{tpu_custom_call.1} parent=1 // pred_fallthru
      _
    // Predicated region
    $region26: #{tpu_custom_call.1} parent=1 // pred_check
      _
    $region27: #{tpu_custom_call.1} parent=1 // pred_check_branch
      %69 = sbr.rel (0) target = $region29
    $region28: #{tpu_custom_call.1} parent=1 // pred_region
      %s71 = ssub.s32 4096, 4096
      %72 = vsyncadd [#allocation10], %s71
      %s73 = sshll.u32 [#allocation9], 4
      %s74 = int_to_ptr.vmem [resolvable:$true] %s73
      %79 = dma.hbm_to_vmem [thread:$0]  %s6, 4096, %s74, [#allocation10], 256, 256, 16
    $region29: #{tpu_custom_call.1} parent=1 // pred_fallthru
      _
    // Predicated region
    $region30: #{tpu_custom_call.1} parent=1 // pred_check
      _
    $region31: #{tpu_custom_call.1} parent=1 // pred_check_branch
      %81 = sbr.rel (0) target = $region33
    $region32: #{tpu_custom_call.1} parent=1 // pred_region
      %s83 = ssub.s32 64, 64
      %84 = vsyncadd [#allocation10], %s83
      %s86 = sshll.u32 [#allocation11], 4
      %s87 = int_to_ptr.vmem [resolvable:$true] %s86
      %89 = dma.hbm_to_vmem [thread:$0]  %s7, 64, %s87, [#allocation10]
    $region33: #{tpu_custom_call.1} parent=1 // pred_fallthru
      _
    // Predicated region
    $region34: #{tpu_custom_call.1} parent=1 // pred_check
      _
    $region35: #{tpu_custom_call.1} parent=1 // pred_check_branch
      %91 = sbr.rel (0) target = $region37
    $region36: #{tpu_custom_call.1} parent=1 // pred_region
      _
    $region37: #{tpu_custom_call.1} parent=1 // pred_fallthru
      _
    // Predicated region
    $region38: #{tpu_custom_call.1} parent=1 // pred_check
      _
    $region39: #{tpu_custom_call.1} parent=1 // pred_check_branch
      %93 = sbr.rel (0) target = $region41
    $region40: #{tpu_custom_call.1} parent=1 // pred_region
      _
    $region41: #{tpu_custom_call.1} parent=1 // pred_fallthru
      _
    // Predicated region
    $region42: #{tpu_custom_call.1} parent=1 // pred_check
      _
    $region43: #{tpu_custom_call.1} parent=1 // pred_check_branch
      %95 = sbr.rel (0) target = $region45
    $region44: #{tpu_custom_call.1} parent=1 // pred_region
      %s97 = ssub.s32 64, 64
      %98 = vsyncadd [#allocation13], %s97
      %s100 = sshll.u32 [#allocation12], 4
      %s101 = int_to_ptr.vmem [resolvable:$true] %s100
      %103 = dma.hbm_to_vmem [thread:$0]  %s10, 64, %s101, [#allocation13]
    $region45: #{tpu_custom_call.1} parent=1 // pred_fallthru
      _
    // Predicated region
    $region46: #{tpu_custom_call.1} parent=1 // pred_check
      _
    $region47: #{tpu_custom_call.1} parent=1 // pred_check_branch
      %105 = sbr.rel (0) target = $region49
    $region48: #{tpu_custom_call.1} parent=1 // pred_region
      %s107 = ssub.s32 16, 16
      %108 = vsyncadd [#allocation13], %s107
      %s110 = sshll.u32 [#allocation14], 4
      %s111 = int_to_ptr.vmem [resolvable:$true] %s110
      %113 = dma.hbm_to_vmem [thread:$0]  %s11, 16, %s111, [#allocation13]
    $region49: #{tpu_custom_call.1} parent=1 // pred_fallthru
      _
    // Predicated region
    $region50: #{tpu_custom_call.1} parent=1 // pred_check
      _
    $region51: #{tpu_custom_call.1} parent=1 // pred_check_branch
      %115 = sbr.rel (0) target = $region53
    $region52: #{tpu_custom_call.1} parent=1 // pred_region
      %s117 = ssub.s32 2048, 2048
      %118 = vsyncadd [#allocation16], %s117
      %s119 = sshll.u32 [#allocation15], 4
      %s120 = int_to_ptr.vmem [resolvable:$true] %s119
      %125 = dma.hbm_to_vmem [thread:$0]  %s12, 2048, %s120, [#allocation16], 64, 64, 4
    $region53: #{tpu_custom_call.1} parent=1 // pred_fallthru
      _
    // Predicated region
    $region54: #{tpu_custom_call.1} parent=1 // pred_check
      _
    $region55: #{tpu_custom_call.1} parent=1 // pred_check_branch
      %127 = sbr.rel (0) target = $region57
    $region56: #{tpu_custom_call.1} parent=1 // pred_region
      %s129 = ssub.s32 16, 16
      %130 = vsyncadd [#allocation16], %s129
      %s132 = sshll.u32 [#allocation17], 4
      %s133 = int_to_ptr.vmem [resolvable:$true] %s132
      %135 = dma.hbm_to_vmem [thread:$0]  %s13, 16, %s133, [#allocation16]
    $region57: #{tpu_custom_call.1} parent=1 // pred_fallthru
      _
    // Predicated region
    $region58: #{tpu_custom_call.1} parent=1 // pred_check
      _
    $region59: #{tpu_custom_call.1} parent=1 // pred_check_branch
      %137 = sbr.rel (0) target = $region61
    $region60: #{tpu_custom_call.1} parent=1 // pred_region
      _
    $region61: #{tpu_custom_call.1} parent=1 // pred_fallthru
      _
    // Predicated region
    $region62: #{tpu_custom_call.1} parent=1 // pred_check
      _
    $region63: #{tpu_custom_call.1} parent=1 // pred_check_branch
      %139 = sbr.rel (0) target = $region65
    $region64: #{tpu_custom_call.1} parent=1 // pred_region
      _
    $region65: #{tpu_custom_call.1} parent=1 // pred_fallthru
      _
    // Predicated region
    $region66: #{tpu_custom_call.1} parent=1 // pred_check
      _
    $region67: #{tpu_custom_call.1} parent=1 // pred_check_branch
      %141 = sbr.rel (0) target = $region69
    $region68: #{tpu_custom_call.1} parent=1 // pred_region
      %142 = dma.done [#allocation4], 128
    $region69: #{tpu_custom_call.1} parent=1 // pred_fallthru
      _
    // Predicated region
    $region70: #{tpu_custom_call.1} parent=1 // pred_check
      _
    $region71: #{tpu_custom_call.1} parent=1 // pred_check_branch
      %144 = sbr.rel (0) target = $region73
    $region72: #{tpu_custom_call.1} parent=1 // pred_region
      %145 = dma.done [#allocation7], 64
    $region73: #{tpu_custom_call.1} parent=1 // pred_fallthru
      _
    // Predicated region
    $region74: #{tpu_custom_call.1} parent=1 // pred_check
      _
    $region75: #{tpu_custom_call.1} parent=1 // pred_check_branch
      %147 = sbr.rel (0) target = $region77
    $region76: #{tpu_custom_call.1} parent=1 // pred_region
      %148 = dma.done [#allocation7], 4096
    $region77: #{tpu_custom_call.1} parent=1 // pred_fallthru
      _
    // Predicated region
    $region78: #{tpu_custom_call.1} parent=1 // pred_check
      _
    $region79: #{tpu_custom_call.1} parent=1 // pred_check_branch
      %150 = sbr.rel (0) target = $region81
    $region80: #{tpu_custom_call.1} parent=1 // pred_region
      %151 = dma.done [#allocation10], 4096
    $region81: #{tpu_custom_call.1} parent=1 // pred_fallthru
      _
    // Predicated region
    $region82: #{tpu_custom_call.1} parent=1 // pred_check
      _
    $region83: #{tpu_custom_call.1} parent=1 // pred_check_branch
      %153 = sbr.rel (0) target = $region85
    $region84: #{tpu_custom_call.1} parent=1 // pred_region
      %154 = dma.done [#allocation10], 64
    $region85: #{tpu_custom_call.1} parent=1 // pred_fallthru
      _
    // Predicated region
    $region86: #{tpu_custom_call.1} parent=1 // pred_check
      _
    $region87: #{tpu_custom_call.1} parent=1 // pred_check_branch
      %156 = sbr.rel (0) target = $region89
    $region88: #{tpu_custom_call.1} parent=1 // pred_region
      %157 = dma.done [#allocation13], 64
    $region89: #{tpu_custom_call.1} parent=1 // pred_fallthru
      _
    // Predicated region
    $region90: #{tpu_custom_call.1} parent=1 // pred_check
      _
    $region91: #{tpu_custom_call.1} parent=1 // pred_check_branch
      %159 = sbr.rel (0) target = $region93
    $region92: #{tpu_custom_call.1} parent=1 // pred_region
      %160 = dma.done [#allocation13], 16
    $region93: #{tpu_custom_call.1} parent=1 // pred_fallthru
      _
    // Predicated region
    $region94: #{tpu_custom_call.1} parent=1 // pred_check
      _
    $region95: #{tpu_custom_call.1} parent=1 // pred_check_branch
      %162 = sbr.rel (0) target = $region97
    $region96: #{tpu_custom_call.1} parent=1 // pred_region
      %163 = dma.done [#allocation16], 2048
    $region97: #{tpu_custom_call.1} parent=1 // pred_fallthru
      _
    // Predicated region
    $region98: #{tpu_custom_call.1} parent=1 // pred_check
      _
    $region99: #{tpu_custom_call.1} parent=1 // pred_check_branch
      %165 = sbr.rel (0) target = $region101
    $region100: #{tpu_custom_call.1} parent=1 // pred_region
      %166 = dma.done [#allocation16], 16
    $region101: #{tpu_custom_call.1} parent=1 // pred_fallthru
      _
    %v168 = vld [vmem:[%s1] sm:$0xff]
    %v169 = vld [vmem:[%s1 + $0x8] sm:$0xff]
    %v170 = vld [vmem:[%s1 + $0x10] sm:$0xff]
    %v171 = vld [vmem:[%s1 + $0x18] sm:$0xff]
    %v172 = vld [vmem:[%s1 + $0x20] sm:$0xff]
    %v173 = vld [vmem:[%s1 + $0x28] sm:$0xff]
    %v174 = vld [vmem:[%s1 + $0x30] sm:$0xff]
    %v175 = vld [vmem:[%s1 + $0x38] sm:$0xff]
    %v176 = vpack.c.bf16 %v169, %v168
    %v177 = vpack.c.bf16 %v171, %v170
    %v178 = vpack.c.bf16 %v173, %v172
    %v179 = vpack.c.bf16 %v175, %v174
    %v180 = vld [vmem:[#allocation6] sm:$0xf]
    %v181 = vld [vmem:[%s4] sm:$0x1]
    %v183 = vlaneseq
    %v184 = vshrl.u32 %v183, 7
    %v185 = vsub.s32 0, %v184
    %v186 = vrot.slane %v181, %v185
    %vm188 = vcmask 64512
    %v190 = vsel %vm188, %v176, 0
    %v193 = vsel %vm188, %v177, 0
    %v196 = vsel %vm188, %v178, 0
    %v199 = vsel %vm188, %v179, 0
    %vm201 = vcmask 1043456
    %v203 = vsel %vm201, %v180, 0
    %205 = vmatprep.subr.bf16.mxu0 0
    %206 = vmatpush1.bf16.msra.mxu0 %v203
    %207 = vmatprep.subr.bf16.mxu0 0
    %208 = vmatpush1.bf16.msra.mxu0 0
    %209 = vmatprep.subr.bf16.mxu0 0
    %210 = vmatpush1.bf16.msra.mxu0 0
    %211 = vmatprep.subr.bf16.mxu0 0
    %212 = vmatpush1.bf16.msra.mxu0 0
    %213 = vmatprep.subr.bf16.mxu0 0
    %214 = vmatpush1.bf16.msra.mxu0 0
    %215 = vmatprep.subr.bf16.mxu0 0
    %216 = vmatpush1.bf16.msra.mxu0 0
    %217 = vmatprep.subr.bf16.mxu0 0
    %218 = vmatpush1.bf16.msra.mxu0 0
    %219 = vmatprep.subr.bf16.mxu0 0
    %220 = vmatpush1.bf16.msra.mxu0 0
    %221 = vmatprep.subr.bf16.mxu0 0
    %222 = vmatpush1.bf16.msra.mxu0 0
    %223 = vmatprep.subr.bf16.mxu0 0
    %224 = vmatpush1.bf16.msra.mxu0 0
    %225 = vmatprep.subr.bf16.mxu0 0
    %226 = vmatpush1.bf16.msra.mxu0 0
    %227 = vmatprep.subr.bf16.mxu0 0
    %228 = vmatpush1.bf16.msra.mxu0 0
    %229 = vmatprep.subr.bf16.mxu0 0
    %230 = vmatpush1.bf16.msra.mxu0 0
    %231 = vmatprep.subr.bf16.mxu0 0
    %232 = vmatpush1.bf16.msra.mxu0 0
    %233 = vmatprep.subr.bf16.mxu0 0
    %234 = vmatpush1.bf16.msra.mxu0 0
    %235 = vmatprep.subr.bf16.mxu0 0
    %236 = vmatpush1.bf16.msra.mxu0 0
    %237 = vmatprep.mubr.bf16.mxu0 0
    %238 = vmatmul.mubr.bf16.gmra.mrb[0].mxu0 %v190
    %v239 = vpop.f32.mrb[0].mxu0
    %v240 = vadd.f32 %v186, %v239
    %v241 = vpop.f32.mrb[0].mxu0
    %v242 = vpop.f32.mrb[0].mxu0
    %v243 = vadd.f32 %v186, %v242
    %v244 = vpop.f32.mrb[0].mxu0
    %245 = vmatprep.mubr.bf16.mxu0 0
    %246 = vmatmul.mubr.bf16.gmra.mrb[0].mxu0 %v193
    %v247 = vpop.f32.mrb[0].mxu0
    %v248 = vadd.f32 %v186, %v247
    %v249 = vpop.f32.mrb[0].mxu0
    %v250 = vpop.f32.mrb[0].mxu0
    %v251 = vadd.f32 %v186, %v250
    %v252 = vpop.f32.mrb[0].mxu0
    %253 = vmatprep.mubr.bf16.mxu0 0
    %254 = vmatmul.mubr.bf16.gmra.mrb[0].mxu0 %v196
    %v255 = vpop.f32.mrb[0].mxu0
    %v256 = vadd.f32 %v186, %v255
    %v257 = vpop.f32.mrb[0].mxu0
    %v258 = vpop.f32.mrb[0].mxu0
    %v259 = vadd.f32 %v186, %v258
    %v260 = vpop.f32.mrb[0].mxu0
    %261 = vmatprep.mubr.bf16.mxu0 0
    %262 = vmatmul.mubr.bf16.gmra.mrb[0].mxu0 %v199
    %v263 = vpop.f32.mrb[0].mxu0
    %v264 = vadd.f32 %v186, %v263
    %v265 = vpop.f32.mrb[0].mxu0
    %v266 = vpop.f32.mrb[0].mxu0
    %v267 = vadd.f32 %v186, %v266
    %v268 = vpop.f32.mrb[0].mxu0
    %269 = vdwg.mxu0
    %v270 = vmax.f32 %v240, 0.0
    %v271 = vmax.f32 %v243, 0.0
    %v272 = vmax.f32 %v248, 0.0
    %v273 = vmax.f32 %v251, 0.0
    %v274 = vmax.f32 %v256, 0.0
    %v275 = vmax.f32 %v259, 0.0
    %v276 = vmax.f32 %v264, 0.0
    %v277 = vmax.f32 %v267, 0.0
    %v278 = vpack.c.bf16 %v271, %v270
    %v279 = vpack.c.bf16 %v273, %v272
    %v280 = vpack.c.bf16 %v275, %v274
    %v281 = vpack.c.bf16 %v277, %v276
    %v282 = vld [vmem:[#allocation8] sm:$0xff]
    %v283 = vld [vmem:[#allocation8 + $0x8] sm:$0xff]
    %v284 = vld [vmem:[#allocation8 + $0x10] sm:$0xff]
    %v285 = vld [vmem:[#allocation8 + $0x18] sm:$0xff]
    %v286 = vld [vmem:[#allocation8 + $0x20] sm:$0xff]
    %v287 = vld [vmem:[#allocation8 + $0x28] sm:$0xff]
    %v288 = vld [vmem:[#allocation8 + $0x30] sm:$0xff]
    %v289 = vld [vmem:[#allocation8 + $0x38] sm:$0xff]
    %v290 = vld [vmem:[#allocation8 + $0x40] sm:$0xff]
    %v291 = vld [vmem:[#allocation8 + $0x48] sm:$0xff]
    %v292 = vld [vmem:[#allocation8 + $0x50] sm:$0xff]
    %v293 = vld [vmem:[#allocation8 + $0x58] sm:$0xff]
    %v294 = vld [vmem:[#allocation8 + $0x60] sm:$0xff]
    %v295 = vld [vmem:[#allocation8 + $0x68] sm:$0xff]
    %v296 = vld [vmem:[#allocation8 + $0x70] sm:$0xff]
    %v297 = vld [vmem:[#allocation8 + $0x78] sm:$0xff]
    %v298 = vld [vmem:[#allocation8 + $0x80] sm:$0xff]
    %v299 = vld [vmem:[#allocation8 + $0x88] sm:$0xff]
    %v300 = vld [vmem:[#allocation8 + $0x90] sm:$0xff]
    %v301 = vld [vmem:[#allocation8 + $0x98] sm:$0xff]
    %v302 = vld [vmem:[#allocation8 + $0xa0] sm:$0xff]
    %v303 = vld [vmem:[#allocation8 + $0xa8] sm:$0xff]
    %v304 = vld [vmem:[#allocation8 + $0xb0] sm:$0xff]
    %v305 = vld [vmem:[#allocation8 + $0xb8] sm:$0xff]
    %v306 = vld [vmem:[#allocation8 + $0xc0] sm:$0xff]
    %v307 = vld [vmem:[#allocation8 + $0xc8] sm:$0xff]
    %v308 = vld [vmem:[#allocation8 + $0xd0] sm:$0xff]
    %v309 = vld [vmem:[#allocation8 + $0xd8] sm:$0xff]
    %v310 = vld [vmem:[#allocation8 + $0xe0] sm:$0xff]
    %v311 = vld [vmem:[#allocation8 + $0xe8] sm:$0xff]
    %v312 = vld [vmem:[#allocation8 + $0xf0] sm:$0xff]
    %v313 = vld [vmem:[#allocation8 + $0xf8] sm:$0xff]
    %v314 = vld [vmem:[#allocation11] sm:$0xf]
    %v316 = vlaneseq
    %v317 = vshrl.u32 %v316, 7
    %v318 = vsub.s32 0, %v317
    %v319 = vrot.slane %v314, %v318
    %v320 = vlaneseq
    %v321 = vshrl.u32 %v320, 7
    %v322 = vsub.s32 1, %v321
    %v323 = vrot.slane %v314, %v322
    %v324 = vlaneseq
    %v325 = vshrl.u32 %v324, 7
    %v326 = vsub.s32 2, %v325
    %v327 = vrot.slane %v314, %v326
    %v328 = vlaneseq
    %v329 = vshrl.u32 %v328, 7
    %v330 = vsub.s32 3, %v329
    %v331 = vrot.slane %v314, %v330
    %v368 = vunpack.c.l.b16 %v282
    %v369 = vunpack.c.h.b16 %v282
    %v370 = vunpack.c.l.b16 %v283
    %v371 = vunpack.c.h.b16 %v283
    %v372 = vunpack.c.l.b16 %v284
    %v373 = vunpack.c.h.b16 %v284
    %v374 = vunpack.c.l.b16 %v285
    %v375 = vunpack.c.h.b16 %v285
    %v376 = vunpack.c.l.b16 %v286
    %v377 = vunpack.c.h.b16 %v286
    %v378 = vunpack.c.l.b16 %v287
    %v379 = vunpack.c.h.b16 %v287
    %v380 = vunpack.c.l.b16 %v288
    %v381 = vunpack.c.h.b16 %v288
    %v382 = vunpack.c.l.b16 %v289
    %v383 = vunpack.c.h.b16 %v289
    %v384 = vunpack.c.l.b16 %v290
    %v385 = vunpack.c.h.b16 %v290
    %v386 = vunpack.c.l.b16 %v291
    %v387 = vunpack.c.h.b16 %v291
    %v388 = vunpack.c.l.b16 %v292
    %v389 = vunpack.c.h.b16 %v292
    %v390 = vunpack.c.l.b16 %v293
    %v391 = vunpack.c.h.b16 %v293
    %v392 = vunpack.c.l.b16 %v294
    %v393 = vunpack.c.h.b16 %v294
    %v394 = vunpack.c.l.b16 %v295
    %v395 = vunpack.c.h.b16 %v295
    %v396 = vunpack.c.l.b16 %v296
    %v397 = vunpack.c.h.b16 %v296
    %v398 = vunpack.c.l.b16 %v297
    %v399 = vunpack.c.h.b16 %v297
    %v400 = vunpack.c.l.b16 %v298
    %v401 = vunpack.c.h.b16 %v298
    %v402 = vunpack.c.l.b16 %v299
    %v403 = vunpack.c.h.b16 %v299
    %v404 = vunpack.c.l.b16 %v300
    %v405 = vunpack.c.h.b16 %v300
    %v406 = vunpack.c.l.b16 %v301
    %v407 = vunpack.c.h.b16 %v301
    %v408 = vunpack.c.l.b16 %v302
    %v409 = vunpack.c.h.b16 %v302
    %v410 = vunpack.c.l.b16 %v303
    %v411 = vunpack.c.h.b16 %v303
    %v412 = vunpack.c.l.b16 %v304
    %v413 = vunpack.c.h.b16 %v304
    %v414 = vunpack.c.l.b16 %v305
    %v415 = vunpack.c.h.b16 %v305
    %v416 = vunpack.c.l.b16 %v306
    %v417 = vunpack.c.h.b16 %v306
    %v418 = vunpack.c.l.b16 %v307
    %v419 = vunpack.c.h.b16 %v307
    %v420 = vunpack.c.l.b16 %v308
    %v421 = vunpack.c.h.b16 %v308
    %v422 = vunpack.c.l.b16 %v309
    %v423 = vunpack.c.h.b16 %v309
    %v424 = vunpack.c.l.b16 %v310
    %v425 = vunpack.c.h.b16 %v310
    %v426 = vunpack.c.l.b16 %v311
    %v427 = vunpack.c.h.b16 %v311
    %v428 = vunpack.c.l.b16 %v312
    %v429 = vunpack.c.h.b16 %v312
    %v430 = vunpack.c.l.b16 %v313
    %v431 = vunpack.c.h.b16 %v313
    %v432 = vpack.c.b16 %v372, %v368
    %v433 = vpack.c.b16 %v373, %v369
    %v434 = vpack.c.b16 %v374, %v370
    %v435 = vpack.c.b16 %v375, %v371
    %v436 = vpack.c.b16 %v380, %v376
    %v437 = vpack.c.b16 %v381, %v377
    %v438 = vpack.c.b16 %v382, %v378
    %v439 = vpack.c.b16 %v383, %v379
    %v440 = vpack.c.b16 %v388, %v384
    %v441 = vpack.c.b16 %v389, %v385
    %v442 = vpack.c.b16 %v390, %v386
    %v443 = vpack.c.b16 %v391, %v387
    %v444 = vpack.c.b16 %v396, %v392
    %v445 = vpack.c.b16 %v397, %v393
    %v446 = vpack.c.b16 %v398, %v394
    %v447 = vpack.c.b16 %v399, %v395
    %v448 = vpack.c.b16 %v404, %v400
    %v449 = vpack.c.b16 %v405, %v401
    %v450 = vpack.c.b16 %v406, %v402
    %v451 = vpack.c.b16 %v407, %v403
    %v452 = vpack.c.b16 %v412, %v408
    %v453 = vpack.c.b16 %v413, %v409
    %v454 = vpack.c.b16 %v414, %v410
    %v455 = vpack.c.b16 %v415, %v411
    %v456 = vpack.c.b16 %v420, %v416
    %v457 = vpack.c.b16 %v421, %v417
    %v458 = vpack.c.b16 %v422, %v418
    %v459 = vpack.c.b16 %v423, %v419
    %v460 = vpack.c.b16 %v428, %v424
    %v461 = vpack.c.b16 %v429, %v425
    %v462 = vpack.c.b16 %v430, %v426
    %v463 = vpack.c.b16 %v431, %v427
    %496 = vmatprep.subr.bf16.mxu0 %v433
    %497 = vmatpush1.bf16.msra.mxu0 %v432
    %498 = vmatprep.subr.bf16.mxu0 %v437
    %499 = vmatpush1.bf16.msra.mxu0 %v436
    %500 = vmatprep.subr.bf16.mxu0 %v441
    %501 = vmatpush1.bf16.msra.mxu0 %v440
    %502 = vmatprep.subr.bf16.mxu0 %v445
    %503 = vmatpush1.bf16.msra.mxu0 %v444
    %504 = vmatprep.subr.bf16.mxu0 %v449
    %505 = vmatpush1.bf16.msra.mxu0 %v448
    %506 = vmatprep.subr.bf16.mxu0 %v453
    %507 = vmatpush1.bf16.msra.mxu0 %v452
    %508 = vmatprep.subr.bf16.mxu0 %v457
    %509 = vmatpush1.bf16.msra.mxu0 %v456
    %510 = vmatprep.subr.bf16.mxu0 %v461
    %511 = vmatpush1.bf16.msra.mxu0 %v460
    %512 = vmatprep.subr.bf16.mxu0 0
    %513 = vmatpush1.bf16.msra.mxu0 0
    %514 = vmatprep.subr.bf16.mxu0 0
    %515 = vmatpush1.bf16.msra.mxu0 0
    %516 = vmatprep.subr.bf16.mxu0 0
    %517 = vmatpush1.bf16.msra.mxu0 0
    %518 = vmatprep.subr.bf16.mxu0 0
    %519 = vmatpush1.bf16.msra.mxu0 0
    %520 = vmatprep.subr.bf16.mxu0 0
    %521 = vmatpush1.bf16.msra.mxu0 0
    %522 = vmatprep.subr.bf16.mxu0 0
    %523 = vmatpush1.bf16.msra.mxu0 0
    %524 = vmatprep.subr.bf16.mxu0 0
    %525 = vmatpush1.bf16.msra.mxu0 0
    %526 = vmatprep.subr.bf16.mxu0 0
    %527 = vmatpush1.bf16.msra.mxu0 0
    %528 = vmatprep.mubr.bf16.mxu0 0
    %529 = vmatmul.mubr.bf16.gmra.mrb[0].mxu0 %v278
    %v530 = vpop.f32.mrb[0].mxu0
    %v531 = vadd.f32 %v319, %v530
    %v532 = vpop.f32.mrb[0].mxu0
    %v533 = vadd.f32 %v323, %v532
    %v534 = vpop.f32.mrb[0].mxu0
    %v535 = vadd.f32 %v319, %v534
    %v536 = vpop.f32.mrb[0].mxu0
    %v537 = vadd.f32 %v323, %v536
    %538 = vmatprep.mubr.bf16.mxu0 0
    %539 = vmatmul.mubr.bf16.gmra.mrb[0].mxu0 %v279
    %v540 = vpop.f32.mrb[0].mxu0
    %v541 = vadd.f32 %v319, %v540
    %v542 = vpop.f32.mrb[0].mxu0
    %v543 = vadd.f32 %v323, %v542
    %v544 = vpop.f32.mrb[0].mxu0
    %v545 = vadd.f32 %v319, %v544
    %v546 = vpop.f32.mrb[0].mxu0
    %v547 = vadd.f32 %v323, %v546
    %548 = vmatprep.mubr.bf16.mxu0 0
    %549 = vmatmul.mubr.bf16.gmra.mrb[0].mxu0 %v280
    %v550 = vpop.f32.mrb[0].mxu0
    %v551 = vadd.f32 %v319, %v550
    %v552 = vpop.f32.mrb[0].mxu0
    %v553 = vadd.f32 %v323, %v552
    %v554 = vpop.f32.mrb[0].mxu0
    %v555 = vadd.f32 %v319, %v554
    %v556 = vpop.f32.mrb[0].mxu0
    %v557 = vadd.f32 %v323, %v556
    %558 = vmatprep.mubr.bf16.mxu0 0
    %559 = vmatmul.mubr.bf16.gmra.mrb[0].mxu0 %v281
    %v560 = vpop.f32.mrb[0].mxu0
    %v561 = vadd.f32 %v319, %v560
    %v562 = vpop.f32.mrb[0].mxu0
    %v563 = vadd.f32 %v323, %v562
    %v564 = vpop.f32.mrb[0].mxu0
    %v565 = vadd.f32 %v319, %v564
    %v566 = vpop.f32.mrb[0].mxu0
    %v567 = vadd.f32 %v323, %v566
    %568 = vdwg.mxu0
    %569 = vmatprep.subr.bf16.mxu0 %v435
    %570 = vmatpush1.bf16.msra.mxu0 %v434
    %571 = vmatprep.subr.bf16.mxu0 %v439
    %572 = vmatpush1.bf16.msra.mxu0 %v438
    %573 = vmatprep.subr.bf16.mxu0 %v443
    %574 = vmatpush1.bf16.msra.mxu0 %v442
    %575 = vmatprep.subr.bf16.mxu0 %v447
    %576 = vmatpush1.bf16.msra.mxu0 %v446
    %577 = vmatprep.subr.bf16.mxu0 %v451
    %578 = vmatpush1.bf16.msra.mxu0 %v450
    %579 = vmatprep.subr.bf16.mxu0 %v455
    %580 = vmatpush1.bf16.msra.mxu0 %v454
    %581 = vmatprep.subr.bf16.mxu0 %v459
    %582 = vmatpush1.bf16.msra.mxu0 %v458
    %583 = vmatprep.subr.bf16.mxu0 %v463
    %584 = vmatpush1.bf16.msra.mxu0 %v462
    %585 = vmatprep.subr.bf16.mxu0 0
    %586 = vmatpush1.bf16.msra.mxu0 0
    %587 = vmatprep.subr.bf16.mxu0 0
    %588 = vmatpush1.bf16.msra.mxu0 0
    %589 = vmatprep.subr.bf16.mxu0 0
    %590 = vmatpush1.bf16.msra.mxu0 0
    %591 = vmatprep.subr.bf16.mxu0 0
    %592 = vmatpush1.bf16.msra.mxu0 0
    %593 = vmatprep.subr.bf16.mxu0 0
    %594 = vmatpush1.bf16.msra.mxu0 0
    %595 = vmatprep.subr.bf16.mxu0 0
    %596 = vmatpush1.bf16.msra.mxu0 0
    %597 = vmatprep.subr.bf16.mxu0 0
    %598 = vmatpush1.bf16.msra.mxu0 0
    %599 = vmatprep.subr.bf16.mxu0 0
    %600 = vmatpush1.bf16.msra.mxu0 0
    %601 = vmatprep.mubr.bf16.mxu0 0
    %602 = vmatmul.mubr.bf16.gmra.mrb[0].mxu0 %v278
    %v603 = vpop.f32.mrb[0].mxu0
    %v604 = vadd.f32 %v327, %v603
    %v605 = vpop.f32.mrb[0].mxu0
    %v606 = vadd.f32 %v331, %v605
    %v607 = vpop.f32.mrb[0].mxu0
    %v608 = vadd.f32 %v327, %v607
    %v609 = vpop.f32.mrb[0].mxu0
    %v610 = vadd.f32 %v331, %v609
    %611 = vmatprep.mubr.bf16.mxu0 0
    %612 = vmatmul.mubr.bf16.gmra.mrb[0].mxu0 %v279
    %v613 = vpop.f32.mrb[0].mxu0
    %v614 = vadd.f32 %v327, %v613
    %v615 = vpop.f32.mrb[0].mxu0
    %v616 = vadd.f32 %v331, %v615
    %v617 = vpop.f32.mrb[0].mxu0
    %v618 = vadd.f32 %v327, %v617
    %v619 = vpop.f32.mrb[0].mxu0
    %v620 = vadd.f32 %v331, %v619
    %621 = vmatprep.mubr.bf16.mxu0 0
    %622 = vmatmul.mubr.bf16.gmra.mrb[0].mxu0 %v280
    %v623 = vpop.f32.mrb[0].mxu0
    %v624 = vadd.f32 %v327, %v623
    %v625 = vpop.f32.mrb[0].mxu0
    %v626 = vadd.f32 %v331, %v625
    %v627 = vpop.f32.mrb[0].mxu0
    %v628 = vadd.f32 %v327, %v627
    %v629 = vpop.f32.mrb[0].mxu0
    %v630 = vadd.f32 %v331, %v629
    %631 = vmatprep.mubr.bf16.mxu0 0
    %632 = vmatmul.mubr.bf16.gmra.mrb[0].mxu0 %v281
    %v633 = vpop.f32.mrb[0].mxu0
    %v634 = vadd.f32 %v327, %v633
    %v635 = vpop.f32.mrb[0].mxu0
    %v636 = vadd.f32 %v331, %v635
    %v637 = vpop.f32.mrb[0].mxu0
    %v638 = vadd.f32 %v327, %v637
    %v639 = vpop.f32.mrb[0].mxu0
    %v640 = vadd.f32 %v331, %v639
    %641 = vdwg.mxu0
    %642 = vst [vmem:[#allocation2] sm:$0xff] %v531
    %643 = vst [vmem:[#allocation2 + $0x8] sm:$0xff] %v533
    %644 = vst [vmem:[#allocation2 + $0x10] sm:$0xff] %v604
    %645 = vst [vmem:[#allocation2 + $0x18] sm:$0xff] %v606
    %646 = vst [vmem:[#allocation2 + $0x20] sm:$0xff] %v535
    %647 = vst [vmem:[#allocation2 + $0x28] sm:$0xff] %v537
    %648 = vst [vmem:[#allocation2 + $0x30] sm:$0xff] %v608
    %649 = vst [vmem:[#allocation2 + $0x38] sm:$0xff] %v610
    %650 = vst [vmem:[#allocation2 + $0x40] sm:$0xff] %v541
    %651 = vst [vmem:[#allocation2 + $0x48] sm:$0xff] %v543
    %652 = vst [vmem:[#allocation2 + $0x50] sm:$0xff] %v614
    %653 = vst [vmem:[#allocation2 + $0x58] sm:$0xff] %v616
    %654 = vst [vmem:[#allocation2 + $0x60] sm:$0xff] %v545
    %655 = vst [vmem:[#allocation2 + $0x68] sm:$0xff] %v547
    %656 = vst [vmem:[#allocation2 + $0x70] sm:$0xff] %v618
    %657 = vst [vmem:[#allocation2 + $0x78] sm:$0xff] %v620
    %658 = vst [vmem:[#allocation2 + $0x80] sm:$0xff] %v551
    %659 = vst [vmem:[#allocation2 + $0x88] sm:$0xff] %v553
    %660 = vst [vmem:[#allocation2 + $0x90] sm:$0xff] %v624
    %661 = vst [vmem:[#allocation2 + $0x98] sm:$0xff] %v626
    %662 = vst [vmem:[#allocation2 + $0xa0] sm:$0xff] %v555
    %663 = vst [vmem:[#allocation2 + $0xa8] sm:$0xff] %v557
    %664 = vst [vmem:[#allocation2 + $0xb0] sm:$0xff] %v628
    %665 = vst [vmem:[#allocation2 + $0xb8] sm:$0xff] %v630
    %666 = vst [vmem:[#allocation2 + $0xc0] sm:$0xff] %v561
    %667 = vst [vmem:[#allocation2 + $0xc8] sm:$0xff] %v563
    %668 = vst [vmem:[#allocation2 + $0xd0] sm:$0xff] %v634
    %669 = vst [vmem:[#allocation2 + $0xd8] sm:$0xff] %v636
    %670 = vst [vmem:[#allocation2 + $0xe0] sm:$0xff] %v565
    %671 = vst [vmem:[#allocation2 + $0xe8] sm:$0xff] %v567
    %672 = vst [vmem:[#allocation2 + $0xf0] sm:$0xff] %v638
    %673 = vst [vmem:[#allocation2 + $0xf8] sm:$0xff] %v640
    %v674 = vld [vmem:[%s2] sm:$0xff]
    %s675 = smul.u32 0, 4
    %s676 = smul.addr %s675, 8
    %s677 = scalar_lea.vmem [#allocation2], %s676
    %v678 = vld [vmem:[%s677] sm:$0xff]
    %v679 = vld [vmem:[%s677 + $0x8] sm:$0xff]
    %v680 = vld [vmem:[%s677 + $0x10] sm:$0xff]
    %v681 = vld [vmem:[%s677 + $0x18] sm:$0xff]
    %v682 = vld [vmem:[#allocation9] sm:$0xff]
    %v683 = vld [vmem:[#allocation9 + $0x8] sm:$0xff]
    %v684 = vld [vmem:[#allocation9 + $0x10] sm:$0xff]
    %v685 = vld [vmem:[#allocation9 + $0x18] sm:$0xff]
    %v686 = vld [vmem:[#allocation9 + $0x20] sm:$0xff]
    %v687 = vld [vmem:[#allocation9 + $0x28] sm:$0xff]
    %v688 = vld [vmem:[#allocation9 + $0x30] sm:$0xff]
    %v689 = vld [vmem:[#allocation9 + $0x38] sm:$0xff]
    %v690 = vld [vmem:[#allocation9 + $0x40] sm:$0xff]
    %v691 = vld [vmem:[#allocation9 + $0x48] sm:$0xff]
    %v692 = vld [vmem:[#allocation9 + $0x50] sm:$0xff]
    %v693 = vld [vmem:[#allocation9 + $0x58] sm:$0xff]
    %v694 = vld [vmem:[#allocation9 + $0x60] sm:$0xff]
    %v695 = vld [vmem:[#allocation9 + $0x68] sm:$0xff]
    %v696 = vld [vmem:[#allocation9 + $0x70] sm:$0xff]
    %v697 = vld [vmem:[#allocation9 + $0x78] sm:$0xff]
    %v698 = vld [vmem:[#allocation9 + $0x80] sm:$0xff]
    %v699 = vld [vmem:[#allocation9 + $0x88] sm:$0xff]
    %v700 = vld [vmem:[#allocation9 + $0x90] sm:$0xff]
    %v701 = vld [vmem:[#allocation9 + $0x98] sm:$0xff]
    %v702 = vld [vmem:[#allocation9 + $0xa0] sm:$0xff]
    %v703 = vld [vmem:[#allocation9 + $0xa8] sm:$0xff]
    %v704 = vld [vmem:[#allocation9 + $0xb0] sm:$0xff]
    %v705 = vld [vmem:[#allocation9 + $0xb8] sm:$0xff]
    %v706 = vld [vmem:[#allocation9 + $0xc0] sm:$0xff]
    %v707 = vld [vmem:[#allocation9 + $0xc8] sm:$0xff]
    %v708 = vld [vmem:[#allocation9 + $0xd0] sm:$0xff]
    %v709 = vld [vmem:[#allocation9 + $0xd8] sm:$0xff]
    %v710 = vld [vmem:[#allocation9 + $0xe0] sm:$0xff]
    %v711 = vld [vmem:[#allocation9 + $0xe8] sm:$0xff]
    %v712 = vld [vmem:[#allocation9 + $0xf0] sm:$0xff]
    %v713 = vld [vmem:[#allocation9 + $0xf8] sm:$0xff]
    %v746 = vunpack.c.l.b16 %v682
    %v747 = vunpack.c.h.b16 %v682
    %v748 = vunpack.c.l.b16 %v683
    %v749 = vunpack.c.h.b16 %v683
    %v750 = vunpack.c.l.b16 %v684
    %v751 = vunpack.c.h.b16 %v684
    %v752 = vunpack.c.l.b16 %v685
    %v753 = vunpack.c.h.b16 %v685
    %v754 = vunpack.c.l.b16 %v686
    %v755 = vunpack.c.h.b16 %v686
    %v756 = vunpack.c.l.b16 %v687
    %v757 = vunpack.c.h.b16 %v687
    %v758 = vunpack.c.l.b16 %v688
    %v759 = vunpack.c.h.b16 %v688
    %v760 = vunpack.c.l.b16 %v689
    %v761 = vunpack.c.h.b16 %v689
    %v762 = vunpack.c.l.b16 %v690
    %v763 = vunpack.c.h.b16 %v690
    %v764 = vunpack.c.l.b16 %v691
    %v765 = vunpack.c.h.b16 %v691
    %v766 = vunpack.c.l.b16 %v692
    %v767 = vunpack.c.h.b16 %v692
    %v768 = vunpack.c.l.b16 %v693
    %v769 = vunpack.c.h.b16 %v693
    %v770 = vunpack.c.l.b16 %v694
    %v771 = vunpack.c.h.b16 %v694
    %v772 = vunpack.c.l.b16 %v695
    %v773 = vunpack.c.h.b16 %v695
    %v774 = vunpack.c.l.b16 %v696
    %v775 = vunpack.c.h.b16 %v696
    %v776 = vunpack.c.l.b16 %v697
    %v777 = vunpack.c.h.b16 %v697
    %v778 = vunpack.c.l.b16 %v698
    %v779 = vunpack.c.h.b16 %v698
    %v780 = vunpack.c.l.b16 %v699
    %v781 = vunpack.c.h.b16 %v699
    %v782 = vunpack.c.l.b16 %v700
    %v783 = vunpack.c.h.b16 %v700
    %v784 = vunpack.c.l.b16 %v701
    %v785 = vunpack.c.h.b16 %v701
    %v786 = vunpack.c.l.b16 %v702
    %v787 = vunpack.c.h.b16 %v702
    %v788 = vunpack.c.l.b16 %v703
    %v789 = vunpack.c.h.b16 %v703
    %v790 = vunpack.c.l.b16 %v704
    %v791 = vunpack.c.h.b16 %v704
    %v792 = vunpack.c.l.b16 %v705
    %v793 = vunpack.c.h.b16 %v705
    %v794 = vunpack.c.l.b16 %v706
    %v795 = vunpack.c.h.b16 %v706
    %v796 = vunpack.c.l.b16 %v707
    %v797 = vunpack.c.h.b16 %v707
    %v798 = vunpack.c.l.b16 %v708
    %v799 = vunpack.c.h.b16 %v708
    %v800 = vunpack.c.l.b16 %v709
    %v801 = vunpack.c.h.b16 %v709
    %v802 = vunpack.c.l.b16 %v710
    %v803 = vunpack.c.h.b16 %v710
    %v804 = vunpack.c.l.b16 %v711
    %v805 = vunpack.c.h.b16 %v711
    %v806 = vunpack.c.l.b16 %v712
    %v807 = vunpack.c.h.b16 %v712
    %v808 = vunpack.c.l.b16 %v713
    %v809 = vunpack.c.h.b16 %v713
    %v810 = vpack.c.b16 %v750, %v746
    %v811 = vpack.c.b16 %v751, %v747
    %v812 = vpack.c.b16 %v752, %v748
    %v813 = vpack.c.b16 %v753, %v749
    %v814 = vpack.c.b16 %v758, %v754
    %v815 = vpack.c.b16 %v759, %v755
    %v816 = vpack.c.b16 %v760, %v756
    %v817 = vpack.c.b16 %v761, %v757
    %v818 = vpack.c.b16 %v766, %v762
    %v819 = vpack.c.b16 %v767, %v763
    %v820 = vpack.c.b16 %v768, %v764
    %v821 = vpack.c.b16 %v769, %v765
    %v822 = vpack.c.b16 %v774, %v770
    %v823 = vpack.c.b16 %v775, %v771
    %v824 = vpack.c.b16 %v776, %v772
    %v825 = vpack.c.b16 %v777, %v773
    %v826 = vpack.c.b16 %v782, %v778
    %v827 = vpack.c.b16 %v783, %v779
    %v828 = vpack.c.b16 %v784, %v780
    %v829 = vpack.c.b16 %v785, %v781
    %v830 = vpack.c.b16 %v790, %v786
    %v831 = vpack.c.b16 %v791, %v787
    %v832 = vpack.c.b16 %v792, %v788
    %v833 = vpack.c.b16 %v793, %v789
    %v834 = vpack.c.b16 %v798, %v794
    %v835 = vpack.c.b16 %v799, %v795
    %v836 = vpack.c.b16 %v800, %v796
    %v837 = vpack.c.b16 %v801, %v797
    %v838 = vpack.c.b16 %v806, %v802
    %v839 = vpack.c.b16 %v807, %v803
    %v840 = vpack.c.b16 %v808, %v804
    %v841 = vpack.c.b16 %v809, %v805
    %874 = vmatprep.subr.bf16.mxu0 %v811
    %875 = vmatpush1.bf16.msra.mxu0 %v810
    %876 = vmatprep.subr.bf16.mxu0 %v815
    %877 = vmatpush1.bf16.msra.mxu0 %v814
    %878 = vmatprep.subr.bf16.mxu0 %v819
    %879 = vmatpush1.bf16.msra.mxu0 %v818
    %880 = vmatprep.subr.bf16.mxu0 %v823
    %881 = vmatpush1.bf16.msra.mxu0 %v822
    %882 = vmatprep.subr.bf16.mxu0 %v827
    %883 = vmatpush1.bf16.msra.mxu0 %v826
    %884 = vmatprep.subr.bf16.mxu0 %v831
    %885 = vmatpush1.bf16.msra.mxu0 %v830
    %886 = vmatprep.subr.bf16.mxu0 %v835
    %887 = vmatpush1.bf16.msra.mxu0 %v834
    %888 = vmatprep.subr.bf16.mxu0 %v839
    %889 = vmatpush1.bf16.msra.mxu0 %v838
    %890 = vmatprep.subr.bf16.mxu0 0
    %891 = vmatpush1.bf16.msra.mxu0 0
    %892 = vmatprep.subr.bf16.mxu0 0
    %893 = vmatpush1.bf16.msra.mxu0 0
    %894 = vmatprep.subr.bf16.mxu0 0
    %895 = vmatpush1.bf16.msra.mxu0 0
    %896 = vmatprep.subr.bf16.mxu0 0
    %897 = vmatpush1.bf16.msra.mxu0 0
    %898 = vmatprep.subr.bf16.mxu0 0
    %899 = vmatpush1.bf16.msra.mxu0 0
    %900 = vmatprep.subr.bf16.mxu0 0
    %901 = vmatpush1.bf16.msra.mxu0 0
    %902 = vmatprep.subr.bf16.mxu0 0
    %903 = vmatpush1.bf16.msra.mxu0 0
    %904 = vmatprep.subr.bf16.mxu0 0
    %905 = vmatpush1.bf16.msra.mxu0 0
    %906 = vmatprep.mubr.bf16.mxu0 0
    %907 = vmatmul.mubr.bf16.gmra.mrb[0].mxu0 0
    %v908 = vpop.f32.mrb[0].mxu0
    %v909 = vadd.f32 0.0, %v908
    %v910 = vpop.f32.mrb[0].mxu0
    %v911 = vadd.f32 0.0, %v910
    %v912 = vpop.f32.mrb[0].mxu0
    %v913 = vpop.f32.mrb[0].mxu0
    %914 = vdwg.mxu0
    %915 = vmatprep.subr.bf16.mxu0 %v813
    %916 = vmatpush1.bf16.msra.mxu0 %v812
    %917 = vmatprep.subr.bf16.mxu0 %v817
    %918 = vmatpush1.bf16.msra.mxu0 %v816
    %919 = vmatprep.subr.bf16.mxu0 %v821
    %920 = vmatpush1.bf16.msra.mxu0 %v820
    %921 = vmatprep.subr.bf16.mxu0 %v825
    %922 = vmatpush1.bf16.msra.mxu0 %v824
    %923 = vmatprep.subr.bf16.mxu0 %v829
    %924 = vmatpush1.bf16.msra.mxu0 %v828
    %925 = vmatprep.subr.bf16.mxu0 %v833
    %926 = vmatpush1.bf16.msra.mxu0 %v832
    %927 = vmatprep.subr.bf16.mxu0 %v837
    %928 = vmatpush1.bf16.msra.mxu0 %v836
    %929 = vmatprep.subr.bf16.mxu0 %v841
    %930 = vmatpush1.bf16.msra.mxu0 %v840
    %931 = vmatprep.subr.bf16.mxu0 0
    %932 = vmatpush1.bf16.msra.mxu0 0
    %933 = vmatprep.subr.bf16.mxu0 0
    %934 = vmatpush1.bf16.msra.mxu0 0
    %935 = vmatprep.subr.bf16.mxu0 0
    %936 = vmatpush1.bf16.msra.mxu0 0
    %937 = vmatprep.subr.bf16.mxu0 0
    %938 = vmatpush1.bf16.msra.mxu0 0
    %939 = vmatprep.subr.bf16.mxu0 0
    %940 = vmatpush1.bf16.msra.mxu0 0
    %941 = vmatprep.subr.bf16.mxu0 0
    %942 = vmatpush1.bf16.msra.mxu0 0
    %943 = vmatprep.subr.bf16.mxu0 0
    %944 = vmatpush1.bf16.msra.mxu0 0
    %945 = vmatprep.subr.bf16.mxu0 0
    %946 = vmatpush1.bf16.msra.mxu0 0
    %947 = vmatprep.mubr.bf16.mxu0 0
    %948 = vmatmul.mubr.bf16.gmra.mrb[0].mxu0 0
    %v949 = vpop.f32.mrb[0].mxu0
    %v950 = vadd.f32 0.0, %v949
    %v951 = vpop.f32.mrb[0].mxu0
    %v952 = vadd.f32 0.0, %v951
    %v953 = vpop.f32.mrb[0].mxu0
    %v954 = vpop.f32.mrb[0].mxu0
    %955 = vdwg.mxu0
    %v956 = vadd.f32 %v678, %v909
    %v957 = vadd.f32 %v679, %v911
    %v958 = vadd.f32 %v680, %v950
    %v959 = vadd.f32 %v681, %v952
    %v960 = vxor.u32 %v956, 2147483648
    %v961 = vxor.u32 %v957, 2147483648
    %v962 = vxor.u32 %v958, 2147483648
    %v963 = vmul.f32 %v960, 1.442695
    %v964 = vpow.pop %v963
    %v965 = vmul.f32 %v961, 1.442695
    %v966 = vpow.pop %v965
    %v967 = vmul.f32 %v962, 1.442695
    %v968 = vpow.pop %v967
    %v969 = vadd.f32 %v964, 1.0
    %v970 = vadd.f32 %v966, 1.0
    %v971 = vadd.f32 %v968, 1.0
    %v972 = vrcp.pop %v969
    %v973 = vmul.f32 1.0, %v972
    %v974 = vrcp.pop %v970
    %v975 = vmul.f32 1.0, %v974
    %v976 = vrcp.pop %v971
    %v977 = vmul.f32 1.0, %v976
    %v978 = vtanh.pop %v959
    %v979 = vmul.f32 %v975, 0.0
    %v980 = vmul.f32 %v973, %v978
    %v981 = vadd.f32 %v979, %v980
    %v982 = vtanh.pop %v981
    %v983 = vmul.f32 %v977, %v982
    %vm984 = vcmp.eq.s32.totalorder %v674, 0
    %v985 = vsel %vm984, 1, 0
    %986 = vset.pattern.permute.xlu0 0
    %987 = vperm.xlu0 %986, %v985
    %v988 = vpop.permute.xlu0 %987
    %vm989 = vcmp.eq.s32.totalorder %v988, 1
    %v990 = vsel %vm989, %v983, 0.0
    %s991 = smul.u32 1, 4
    %s992 = smul.addr %s991, 8
    %s993 = scalar_lea.vmem [#allocation2], %s992
    %v994 = vld [vmem:[%s993] sm:$0xff]
    %v995 = vld [vmem:[%s993 + $0x8] sm:$0xff]
    %v996 = vld [vmem:[%s993 + $0x10] sm:$0xff]
    %v997 = vld [vmem:[%s993 + $0x18] sm:$0xff]
    %v998 = vpack.c.bf16 %v983, %v983
    %999 = vmatprep.subr.bf16.mxu0 %v811
    %1000 = vmatpush1.bf16.msra.mxu0 %v810
    %1001 = vmatprep.subr.bf16.mxu0 %v815
    %1002 = vmatpush1.bf16.msra.mxu0 %v814
    %1003 = vmatprep.subr.bf16.mxu0 %v819
    %1004 = vmatpush1.bf16.msra.mxu0 %v818
    %1005 = vmatprep.subr.bf16.mxu0 %v823
    %1006 = vmatpush1.bf16.msra.mxu0 %v822
    %1007 = vmatprep.subr.bf16.mxu0 %v827
    %1008 = vmatpush1.bf16.msra.mxu0 %v826
    %1009 = vmatprep.subr.bf16.mxu0 %v831
    %1010 = vmatpush1.bf16.msra.mxu0 %v830
    %1011 = vmatprep.subr.bf16.mxu0 %v835
    %1012 = vmatpush1.bf16.msra.mxu0 %v834
    %1013 = vmatprep.subr.bf16.mxu0 %v839
    %1014 = vmatpush1.bf16.msra.mxu0 %v838
    %1015 = vmatprep.subr.bf16.mxu0 0
    %1016 = vmatpush1.bf16.msra.mxu0 0
    %1017 = vmatprep.subr.bf16.mxu0 0
    %1018 = vmatpush1.bf16.msra.mxu0 0
    %1019 = vmatprep.subr.bf16.mxu0 0
    %1020 = vmatpush1.bf16.msra.mxu0 0
    %1021 = vmatprep.subr.bf16.mxu0 0
    %1022 = vmatpush1.bf16.msra.mxu0 0
    %1023 = vmatprep.subr.bf16.mxu0 0
    %1024 = vmatpush1.bf16.msra.mxu0 0
    %1025 = vmatprep.subr.bf16.mxu0 0
    %1026 = vmatpush1.bf16.msra.mxu0 0
    %1027 = vmatprep.subr.bf16.mxu0 0
    %1028 = vmatpush1.bf16.msra.mxu0 0
    %1029 = vmatprep.subr.bf16.mxu0 0
    %1030 = vmatpush1.bf16.msra.mxu0 0
    %1031 = vmatprep.mubr.bf16.mxu0 0
    %1032 = vmatmul.mubr.bf16.gmra.mrb[0].mxu0 %v998
    %v1033 = vpop.f32.mrb[0].mxu0
    %v1034 = vadd.f32 0.0, %v1033
    %v1035 = vpop.f32.mrb[0].mxu0
    %v1036 = vadd.f32 0.0, %v1035
    %v1037 = vpop.f32.mrb[0].mxu0
    %v1038 = vpop.f32.mrb[0].mxu0
    %1039 = vdwg.mxu0
    %1040 = vmatprep.subr.bf16.mxu0 %v813
    %1041 = vmatpush1.bf16.msra.mxu0 %v812
    %1042 = vmatprep.subr.bf16.mxu0 %v817
    %1043 = vmatpush1.bf16.msra.mxu0 %v816
    %1044 = vmatprep.subr.bf16.mxu0 %v821
    %1045 = vmatpush1.bf16.msra.mxu0 %v820
    %1046 = vmatprep.subr.bf16.mxu0 %v825
    %1047 = vmatpush1.bf16.msra.mxu0 %v824
    %1048 = vmatprep.subr.bf16.mxu0 %v829
    %1049 = vmatpush1.bf16.msra.mxu0 %v828
    %1050 = vmatprep.subr.bf16.mxu0 %v833
    %1051 = vmatpush1.bf16.msra.mxu0 %v832
    %1052 = vmatprep.subr.bf16.mxu0 %v837
    %1053 = vmatpush1.bf16.msra.mxu0 %v836
    %1054 = vmatprep.subr.bf16.mxu0 %v841
    %1055 = vmatpush1.bf16.msra.mxu0 %v840
    %1056 = vmatprep.subr.bf16.mxu0 0
    %1057 = vmatpush1.bf16.msra.mxu0 0
    %1058 = vmatprep.subr.bf16.mxu0 0
    %1059 = vmatpush1.bf16.msra.mxu0 0
    %1060 = vmatprep.subr.bf16.mxu0 0
    %1061 = vmatpush1.bf16.msra.mxu0 0
    %1062 = vmatprep.subr.bf16.mxu0 0
    %1063 = vmatpush1.bf16.msra.mxu0 0
    %1064 = vmatprep.subr.bf16.mxu0 0
    %1065 = vmatpush1.bf16.msra.mxu0 0
    %1066 = vmatprep.subr.bf16.mxu0 0
    %1067 = vmatpush1.bf16.msra.mxu0 0
    %1068 = vmatprep.subr.bf16.mxu0 0
    %1069 = vmatpush1.bf16.msra.mxu0 0
    %1070 = vmatprep.subr.bf16.mxu0 0
    %1071 = vmatpush1.bf16.msra.mxu0 0
    %1072 = vmatprep.mubr.bf16.mxu0 0
    %1073 = vmatmul.mubr.bf16.gmra.mrb[0].mxu0 %v998
    %v1074 = vpop.f32.mrb[0].mxu0
    %v1075 = vadd.f32 0.0, %v1074
    %v1076 = vpop.f32.mrb[0].mxu0
    %v1077 = vadd.f32 0.0, %v1076
    %v1078 = vpop.f32.mrb[0].mxu0
    %v1079 = vpop.f32.mrb[0].mxu0
    %1080 = vdwg.mxu0
    %v1081 = vadd.f32 %v994, %v1034
    %v1082 = vadd.f32 %v995, %v1036
    %v1083 = vadd.f32 %v996, %v1075
    %v1084 = vadd.f32 %v997, %v1077
    %v1085 = vxor.u32 %v1081, 2147483648
    %v1086 = vxor.u32 %v1082, 2147483648
    %v1087 = vxor.u32 %v1083, 2147483648
    %v1088 = vmul.f32 %v1085, 1.442695
    %v1089 = vpow.pop %v1088
    %v1090 = vmul.f32 %v1086, 1.442695
    %v1091 = vpow.pop %v1090
    %v1092 = vmul.f32 %v1087, 1.442695
    %v1093 = vpow.pop %v1092
    %v1094 = vadd.f32 %v1089, 1.0
    %v1095 = vadd.f32 %v1091, 1.0
    %v1096 = vadd.f32 %v1093, 1.0
    %v1097 = vrcp.pop %v1094
    %v1098 = vmul.f32 1.0, %v1097
    %v1099 = vrcp.pop %v1095
    %v1100 = vmul.f32 1.0, %v1099
    %v1101 = vrcp.pop %v1096
    %v1102 = vmul.f32 1.0, %v1101
    %v1103 = vtanh.pop %v1084
    %v1104 = vmul.f32 %v1100, %v981
    %v1105 = vmul.f32 %v1098, %v1103
    %v1106 = vadd.f32 %v1104, %v1105
    %v1107 = vtanh.pop %v1106
    %v1108 = vmul.f32 %v1102, %v1107
    %vm1109 = vcmp.eq.s32.totalorder %v674, 1
    %v1110 = vsel %vm1109, 1, 0
    %1111 = vset.pattern.permute.xlu0 0
    %1112 = vperm.xlu0 %1111, %v1110
    %v1113 = vpop.permute.xlu0 %1112
    %vm1114 = vcmp.eq.s32.totalorder %v1113, 1
    %v1115 = vsel %vm1114, %v1108, %v990
    %s1116 = smul.u32 2, 4
    %s1117 = smul.addr %s1116, 8
    %s1118 = scalar_lea.vmem [#allocation2], %s1117
    %v1119 = vld [vmem:[%s1118] sm:$0xff]
    %v1120 = vld [vmem:[%s1118 + $0x8] sm:$0xff]
    %v1121 = vld [vmem:[%s1118 + $0x10] sm:$0xff]
    %v1122 = vld [vmem:[%s1118 + $0x18] sm:$0xff]
    %v1123 = vpack.c.bf16 %v1108, %v1108
    %1124 = vmatprep.subr.bf16.mxu0 %v811
    %1125 = vmatpush1.bf16.msra.mxu0 %v810
    %1126 = vmatprep.subr.bf16.mxu0 %v815
    %1127 = vmatpush1.bf16.msra.mxu0 %v814
    %1128 = vmatprep.subr.bf16.mxu0 %v819
    %1129 = vmatpush1.bf16.msra.mxu0 %v818
    %1130 = vmatprep.subr.bf16.mxu0 %v823
    %1131 = vmatpush1.bf16.msra.mxu0 %v822
    %1132 = vmatprep.subr.bf16.mxu0 %v827
    %1133 = vmatpush1.bf16.msra.mxu0 %v826
    %1134 = vmatprep.subr.bf16.mxu0 %v831
    %1135 = vmatpush1.bf16.msra.mxu0 %v830
    %1136 = vmatprep.subr.bf16.mxu0 %v835
    %1137 = vmatpush1.bf16.msra.mxu0 %v834
    %1138 = vmatprep.subr.bf16.mxu0 %v839
    %1139 = vmatpush1.bf16.msra.mxu0 %v838
    %1140 = vmatprep.subr.bf16.mxu0 0
    %1141 = vmatpush1.bf16.msra.mxu0 0
    %1142 = vmatprep.subr.bf16.mxu0 0
    %1143 = vmatpush1.bf16.msra.mxu0 0
    %1144 = vmatprep.subr.bf16.mxu0 0
    %1145 = vmatpush1.bf16.msra.mxu0 0
    %1146 = vmatprep.subr.bf16.mxu0 0
    %1147 = vmatpush1.bf16.msra.mxu0 0
    %1148 = vmatprep.subr.bf16.mxu0 0
    %1149 = vmatpush1.bf16.msra.mxu0 0
    %1150 = vmatprep.subr.bf16.mxu0 0
    %1151 = vmatpush1.bf16.msra.mxu0 0
    %1152 = vmatprep.subr.bf16.mxu0 0
    %1153 = vmatpush1.bf16.msra.mxu0 0
    %1154 = vmatprep.subr.bf16.mxu0 0
    %1155 = vmatpush1.bf16.msra.mxu0 0
    %1156 = vmatprep.mubr.bf16.mxu0 0
    %1157 = vmatmul.mubr.bf16.gmra.mrb[0].mxu0 %v1123
    %v1158 = vpop.f32.mrb[0].mxu0
    %v1159 = vadd.f32 0.0, %v1158
    %v1160 = vpop.f32.mrb[0].mxu0
    %v1161 = vadd.f32 0.0, %v1160
    %v1162 = vpop.f32.mrb[0].mxu0
    %v1163 = vpop.f32.mrb[0].mxu0
    %1164 = vdwg.mxu0
    %1165 = vmatprep.subr.bf16.mxu0 %v813
    %1166 = vmatpush1.bf16.msra.mxu0 %v812
    %1167 = vmatprep.subr.bf16.mxu0 %v817
    %1168 = vmatpush1.bf16.msra.mxu0 %v816
    %1169 = vmatprep.subr.bf16.mxu0 %v821
    %1170 = vmatpush1.bf16.msra.mxu0 %v820
    %1171 = vmatprep.subr.bf16.mxu0 %v825
    %1172 = vmatpush1.bf16.msra.mxu0 %v824
    %1173 = vmatprep.subr.bf16.mxu0 %v829
    %1174 = vmatpush1.bf16.msra.mxu0 %v828
    %1175 = vmatprep.subr.bf16.mxu0 %v833
    %1176 = vmatpush1.bf16.msra.mxu0 %v832
    %1177 = vmatprep.subr.bf16.mxu0 %v837
    %1178 = vmatpush1.bf16.msra.mxu0 %v836
    %1179 = vmatprep.subr.bf16.mxu0 %v841
    %1180 = vmatpush1.bf16.msra.mxu0 %v840
    %1181 = vmatprep.subr.bf16.mxu0 0
    %1182 = vmatpush1.bf16.msra.mxu0 0
    %1183 = vmatprep.subr.bf16.mxu0 0
    %1184 = vmatpush1.bf16.msra.mxu0 0
    %1185 = vmatprep.subr.bf16.mxu0 0
    %1186 = vmatpush1.bf16.msra.mxu0 0
    %1187 = vmatprep.subr.bf16.mxu0 0
    %1188 = vmatpush1.bf16.msra.mxu0 0
    %1189 = vmatprep.subr.bf16.mxu0 0
    %1190 = vmatpush1.bf16.msra.mxu0 0
    %1191 = vmatprep.subr.bf16.mxu0 0
    %1192 = vmatpush1.bf16.msra.mxu0 0
    %1193 = vmatprep.subr.bf16.mxu0 0
    %1194 = vmatpush1.bf16.msra.mxu0 0
    %1195 = vmatprep.subr.bf16.mxu0 0
    %1196 = vmatpush1.bf16.msra.mxu0 0
    %1197 = vmatprep.mubr.bf16.mxu0 0
    %1198 = vmatmul.mubr.bf16.gmra.mrb[0].mxu0 %v1123
    %v1199 = vpop.f32.mrb[0].mxu0
    %v1200 = vadd.f32 0.0, %v1199
    %v1201 = vpop.f32.mrb[0].mxu0
    %v1202 = vadd.f32 0.0, %v1201
    %v1203 = vpop.f32.mrb[0].mxu0
    %v1204 = vpop.f32.mrb[0].mxu0
    %1205 = vdwg.mxu0
    %v1206 = vadd.f32 %v1119, %v1159
    %v1207 = vadd.f32 %v1120, %v1161
    %v1208 = vadd.f32 %v1121, %v1200
    %v1209 = vadd.f32 %v1122, %v1202
    %v1210 = vxor.u32 %v1206, 2147483648
    %v1211 = vxor.u32 %v1207, 2147483648
    %v1212 = vxor.u32 %v1208, 2147483648
    %v1213 = vmul.f32 %v1210, 1.442695
    %v1214 = vpow.pop %v1213
    %v1215 = vmul.f32 %v1211, 1.442695
    %v1216 = vpow.pop %v1215
    %v1217 = vmul.f32 %v1212, 1.442695
    %v1218 = vpow.pop %v1217
    %v1219 = vadd.f32 %v1214, 1.0
    %v1220 = vadd.f32 %v1216, 1.0
    %v1221 = vadd.f32 %v1218, 1.0
    %v1222 = vrcp.pop %v1219
    %v1223 = vmul.f32 1.0, %v1222
    %v1224 = vrcp.pop %v1220
    %v1225 = vmul.f32 1.0, %v1224
    %v1226 = vrcp.pop %v1221
    %v1227 = vmul.f32 1.0, %v1226
    %v1228 = vtanh.pop %v1209
    %v1229 = vmul.f32 %v1225, %v1106
    %v1230 = vmul.f32 %v1223, %v1228
    %v1231 = vadd.f32 %v1229, %v1230
    %v1232 = vtanh.pop %v1231
    %v1233 = vmul.f32 %v1227, %v1232
    %vm1234 = vcmp.eq.s32.totalorder %v674, 2
    %v1235 = vsel %vm1234, 1, 0
    %1236 = vset.pattern.permute.xlu0 0
    %1237 = vperm.xlu0 %1236, %v1235
    %v1238 = vpop.permute.xlu0 %1237
    %vm1239 = vcmp.eq.s32.totalorder %v1238, 1
    %v1240 = vsel %vm1239, %v1233, %v1115
    %s1241 = smul.u32 3, 4
    %s1242 = smul.addr %s1241, 8
    %s1243 = scalar_lea.vmem [#allocation2], %s1242
    %v1244 = vld [vmem:[%s1243] sm:$0xff]
    %v1245 = vld [vmem:[%s1243 + $0x8] sm:$0xff]
    %v1246 = vld [vmem:[%s1243 + $0x10] sm:$0xff]
    %v1247 = vld [vmem:[%s1243 + $0x18] sm:$0xff]
    %v1248 = vpack.c.bf16 %v1233, %v1233
    %1249 = vmatprep.subr.bf16.mxu0 %v811
    %1250 = vmatpush1.bf16.msra.mxu0 %v810
    %1251 = vmatprep.subr.bf16.mxu0 %v815
    %1252 = vmatpush1.bf16.msra.mxu0 %v814
    %1253 = vmatprep.subr.bf16.mxu0 %v819
    %1254 = vmatpush1.bf16.msra.mxu0 %v818
    %1255 = vmatprep.subr.bf16.mxu0 %v823
    %1256 = vmatpush1.bf16.msra.mxu0 %v822
    %1257 = vmatprep.subr.bf16.mxu0 %v827
    %1258 = vmatpush1.bf16.msra.mxu0 %v826
    %1259 = vmatprep.subr.bf16.mxu0 %v831
    %1260 = vmatpush1.bf16.msra.mxu0 %v830
    %1261 = vmatprep.subr.bf16.mxu0 %v835
    %1262 = vmatpush1.bf16.msra.mxu0 %v834
    %1263 = vmatprep.subr.bf16.mxu0 %v839
    %1264 = vmatpush1.bf16.msra.mxu0 %v838
    %1265 = vmatprep.subr.bf16.mxu0 0
    %1266 = vmatpush1.bf16.msra.mxu0 0
    %1267 = vmatprep.subr.bf16.mxu0 0
    %1268 = vmatpush1.bf16.msra.mxu0 0
    %1269 = vmatprep.subr.bf16.mxu0 0
    %1270 = vmatpush1.bf16.msra.mxu0 0
    %1271 = vmatprep.subr.bf16.mxu0 0
    %1272 = vmatpush1.bf16.msra.mxu0 0
    %1273 = vmatprep.subr.bf16.mxu0 0
    %1274 = vmatpush1.bf16.msra.mxu0 0
    %1275 = vmatprep.subr.bf16.mxu0 0
    %1276 = vmatpush1.bf16.msra.mxu0 0
    %1277 = vmatprep.subr.bf16.mxu0 0
    %1278 = vmatpush1.bf16.msra.mxu0 0
    %1279 = vmatprep.subr.bf16.mxu0 0
    %1280 = vmatpush1.bf16.msra.mxu0 0
    %1281 = vmatprep.mubr.bf16.mxu0 0
    %1282 = vmatmul.mubr.bf16.gmra.mrb[0].mxu0 %v1248
    %v1283 = vpop.f32.mrb[0].mxu0
    %v1284 = vadd.f32 0.0, %v1283
    %v1285 = vpop.f32.mrb[0].mxu0
    %v1286 = vadd.f32 0.0, %v1285
    %v1287 = vpop.f32.mrb[0].mxu0
    %v1288 = vpop.f32.mrb[0].mxu0
    %1289 = vdwg.mxu0
    %1290 = vmatprep.subr.bf16.mxu0 %v813
    %1291 = vmatpush1.bf16.msra.mxu0 %v812
    %1292 = vmatprep.subr.bf16.mxu0 %v817
    %1293 = vmatpush1.bf16.msra.mxu0 %v816
    %1294 = vmatprep.subr.bf16.mxu0 %v821
    %1295 = vmatpush1.bf16.msra.mxu0 %v820
    %1296 = vmatprep.subr.bf16.mxu0 %v825
    %1297 = vmatpush1.bf16.msra.mxu0 %v824
    %1298 = vmatprep.subr.bf16.mxu0 %v829
    %1299 = vmatpush1.bf16.msra.mxu0 %v828
    %1300 = vmatprep.subr.bf16.mxu0 %v833
    %1301 = vmatpush1.bf16.msra.mxu0 %v832
    %1302 = vmatprep.subr.bf16.mxu0 %v837
    %1303 = vmatpush1.bf16.msra.mxu0 %v836
    %1304 = vmatprep.subr.bf16.mxu0 %v841
    %1305 = vmatpush1.bf16.msra.mxu0 %v840
    %1306 = vmatprep.subr.bf16.mxu0 0
    %1307 = vmatpush1.bf16.msra.mxu0 0
    %1308 = vmatprep.subr.bf16.mxu0 0
    %1309 = vmatpush1.bf16.msra.mxu0 0
    %1310 = vmatprep.subr.bf16.mxu0 0
    %1311 = vmatpush1.bf16.msra.mxu0 0
    %1312 = vmatprep.subr.bf16.mxu0 0
    %1313 = vmatpush1.bf16.msra.mxu0 0
    %1314 = vmatprep.subr.bf16.mxu0 0
    %1315 = vmatpush1.bf16.msra.mxu0 0
    %1316 = vmatprep.subr.bf16.mxu0 0
    %1317 = vmatpush1.bf16.msra.mxu0 0
    %1318 = vmatprep.subr.bf16.mxu0 0
    %1319 = vmatpush1.bf16.msra.mxu0 0
    %1320 = vmatprep.subr.bf16.mxu0 0
    %1321 = vmatpush1.bf16.msra.mxu0 0
    %1322 = vmatprep.mubr.bf16.mxu0 0
    %1323 = vmatmul.mubr.bf16.gmra.mrb[0].mxu0 %v1248
    %v1324 = vpop.f32.mrb[0].mxu0
    %v1325 = vadd.f32 0.0, %v1324
    %v1326 = vpop.f32.mrb[0].mxu0
    %v1327 = vadd.f32 0.0, %v1326
    %v1328 = vpop.f32.mrb[0].mxu0
    %v1329 = vpop.f32.mrb[0].mxu0
    %1330 = vdwg.mxu0
    %v1331 = vadd.f32 %v1244, %v1284
    %v1332 = vadd.f32 %v1245, %v1286
    %v1333 = vadd.f32 %v1246, %v1325
    %v1334 = vadd.f32 %v1247, %v1327
    %v1335 = vxor.u32 %v1331, 2147483648
    %v1336 = vxor.u32 %v1332, 2147483648
    %v1337 = vxor.u32 %v1333, 2147483648
    %v1338 = vmul.f32 %v1335, 1.442695
    %v1339 = vpow.pop %v1338
    %v1340 = vmul.f32 %v1336, 1.442695
    %v1341 = vpow.pop %v1340
    %v1342 = vmul.f32 %v1337, 1.442695
    %v1343 = vpow.pop %v1342
    %v1344 = vadd.f32 %v1339, 1.0
    %v1345 = vadd.f32 %v1341, 1.0
    %v1346 = vadd.f32 %v1343, 1.0
    %v1347 = vrcp.pop %v1344
    %v1348 = vmul.f32 1.0, %v1347
    %v1349 = vrcp.pop %v1345
    %v1350 = vmul.f32 1.0, %v1349
    %v1351 = vrcp.pop %v1346
    %v1352 = vmul.f32 1.0, %v1351
    %v1353 = vtanh.pop %v1334
    %v1354 = vmul.f32 %v1350, %v1231
    %v1355 = vmul.f32 %v1348, %v1353
    %v1356 = vadd.f32 %v1354, %v1355
    %v1357 = vtanh.pop %v1356
    %v1358 = vmul.f32 %v1352, %v1357
    %vm1359 = vcmp.eq.s32.totalorder %v674, 3
    %v1360 = vsel %vm1359, 1, 0
    %1361 = vset.pattern.permute.xlu0 0
    %1362 = vperm.xlu0 %1361, %v1360
    %v1363 = vpop.permute.xlu0 %1362
    %vm1364 = vcmp.eq.s32.totalorder %v1363, 1
    %v1365 = vsel %vm1364, %v1358, %v1240
    %s1366 = smul.u32 4, 4
    %s1367 = smul.addr %s1366, 8
    %s1368 = scalar_lea.vmem [#allocation2], %s1367
    %v1369 = vld [vmem:[%s1368] sm:$0xff]
    %v1370 = vld [vmem:[%s1368 + $0x8] sm:$0xff]
    %v1371 = vld [vmem:[%s1368 + $0x10] sm:$0xff]
    %v1372 = vld [vmem:[%s1368 + $0x18] sm:$0xff]
    %v1373 = vpack.c.bf16 %v1358, %v1358
    %1374 = vmatprep.subr.bf16.mxu0 %v811
    %1375 = vmatpush1.bf16.msra.mxu0 %v810
    %1376 = vmatprep.subr.bf16.mxu0 %v815
    %1377 = vmatpush1.bf16.msra.mxu0 %v814
    %1378 = vmatprep.subr.bf16.mxu0 %v819
    %1379 = vmatpush1.bf16.msra.mxu0 %v818
    %1380 = vmatprep.subr.bf16.mxu0 %v823
    %1381 = vmatpush1.bf16.msra.mxu0 %v822
    %1382 = vmatprep.subr.bf16.mxu0 %v827
    %1383 = vmatpush1.bf16.msra.mxu0 %v826
    %1384 = vmatprep.subr.bf16.mxu0 %v831
    %1385 = vmatpush1.bf16.msra.mxu0 %v830
    %1386 = vmatprep.subr.bf16.mxu0 %v835
    %1387 = vmatpush1.bf16.msra.mxu0 %v834
    %1388 = vmatprep.subr.bf16.mxu0 %v839
    %1389 = vmatpush1.bf16.msra.mxu0 %v838
    %1390 = vmatprep.subr.bf16.mxu0 0
    %1391 = vmatpush1.bf16.msra.mxu0 0
    %1392 = vmatprep.subr.bf16.mxu0 0
    %1393 = vmatpush1.bf16.msra.mxu0 0
    %1394 = vmatprep.subr.bf16.mxu0 0
    %1395 = vmatpush1.bf16.msra.mxu0 0
    %1396 = vmatprep.subr.bf16.mxu0 0
    %1397 = vmatpush1.bf16.msra.mxu0 0
    %1398 = vmatprep.subr.bf16.mxu0 0
    %1399 = vmatpush1.bf16.msra.mxu0 0
    %1400 = vmatprep.subr.bf16.mxu0 0
    %1401 = vmatpush1.bf16.msra.mxu0 0
    %1402 = vmatprep.subr.bf16.mxu0 0
    %1403 = vmatpush1.bf16.msra.mxu0 0
    %1404 = vmatprep.subr.bf16.mxu0 0
    %1405 = vmatpush1.bf16.msra.mxu0 0
    %1406 = vmatprep.mubr.bf16.mxu0 0
    %1407 = vmatmul.mubr.bf16.gmra.mrb[0].mxu0 %v1373
    %v1408 = vpop.f32.mrb[0].mxu0
    %v1409 = vadd.f32 0.0, %v1408
    %v1410 = vpop.f32.mrb[0].mxu0
    %v1411 = vadd.f32 0.0, %v1410
    %v1412 = vpop.f32.mrb[0].mxu0
    %v1413 = vpop.f32.mrb[0].mxu0
    %1414 = vdwg.mxu0
    %1415 = vmatprep.subr.bf16.mxu0 %v813
    %1416 = vmatpush1.bf16.msra.mxu0 %v812
    %1417 = vmatprep.subr.bf16.mxu0 %v817
    %1418 = vmatpush1.bf16.msra.mxu0 %v816
    %1419 = vmatprep.subr.bf16.mxu0 %v821
    %1420 = vmatpush1.bf16.msra.mxu0 %v820
    %1421 = vmatprep.subr.bf16.mxu0 %v825
    %1422 = vmatpush1.bf16.msra.mxu0 %v824
    %1423 = vmatprep.subr.bf16.mxu0 %v829
    %1424 = vmatpush1.bf16.msra.mxu0 %v828
    %1425 = vmatprep.subr.bf16.mxu0 %v833
    %1426 = vmatpush1.bf16.msra.mxu0 %v832
    %1427 = vmatprep.subr.bf16.mxu0 %v837
    %1428 = vmatpush1.bf16.msra.mxu0 %v836
    %1429 = vmatprep.subr.bf16.mxu0 %v841
    %1430 = vmatpush1.bf16.msra.mxu0 %v840
    %1431 = vmatprep.subr.bf16.mxu0 0
    %1432 = vmatpush1.bf16.msra.mxu0 0
    %1433 = vmatprep.subr.bf16.mxu0 0
    %1434 = vmatpush1.bf16.msra.mxu0 0
    %1435 = vmatprep.subr.bf16.mxu0 0
    %1436 = vmatpush1.bf16.msra.mxu0 0
    %1437 = vmatprep.subr.bf16.mxu0 0
    %1438 = vmatpush1.bf16.msra.mxu0 0
    %1439 = vmatprep.subr.bf16.mxu0 0
    %1440 = vmatpush1.bf16.msra.mxu0 0
    %1441 = vmatprep.subr.bf16.mxu0 0
    %1442 = vmatpush1.bf16.msra.mxu0 0
    %1443 = vmatprep.subr.bf16.mxu0 0
    %1444 = vmatpush1.bf16.msra.mxu0 0
    %1445 = vmatprep.subr.bf16.mxu0 0
    %1446 = vmatpush1.bf16.msra.mxu0 0
    %1447 = vmatprep.mubr.bf16.mxu0 0
    %1448 = vmatmul.mubr.bf16.gmra.mrb[0].mxu0 %v1373
    %v1449 = vpop.f32.mrb[0].mxu0
    %v1450 = vadd.f32 0.0, %v1449
    %v1451 = vpop.f32.mrb[0].mxu0
    %v1452 = vadd.f32 0.0, %v1451
    %v1453 = vpop.f32.mrb[0].mxu0
    %v1454 = vpop.f32.mrb[0].mxu0
    %1455 = vdwg.mxu0
    %v1456 = vadd.f32 %v1369, %v1409
    %v1457 = vadd.f32 %v1370, %v1411
    %v1458 = vadd.f32 %v1371, %v1450
    %v1459 = vadd.f32 %v1372, %v1452
    %v1460 = vxor.u32 %v1456, 2147483648
    %v1461 = vxor.u32 %v1457, 2147483648
    %v1462 = vxor.u32 %v1458, 2147483648
    %v1463 = vmul.f32 %v1460, 1.442695
    %v1464 = vpow.pop %v1463
    %v1465 = vmul.f32 %v1461, 1.442695
    %v1466 = vpow.pop %v1465
    %v1467 = vmul.f32 %v1462, 1.442695
    %v1468 = vpow.pop %v1467
    %v1469 = vadd.f32 %v1464, 1.0
    %v1470 = vadd.f32 %v1466, 1.0
    %v1471 = vadd.f32 %v1468, 1.0
    %v1472 = vrcp.pop %v1469
    %v1473 = vmul.f32 1.0, %v1472
    %v1474 = vrcp.pop %v1470
    %v1475 = vmul.f32 1.0, %v1474
    %v1476 = vrcp.pop %v1471
    %v1477 = vmul.f32 1.0, %v1476
    %v1478 = vtanh.pop %v1459
    %v1479 = vmul.f32 %v1475, %v1356
    %v1480 = vmul.f32 %v1473, %v1478
    %v1481 = vadd.f32 %v1479, %v1480
    %v1482 = vtanh.pop %v1481
    %v1483 = vmul.f32 %v1477, %v1482
    %vm1484 = vcmp.eq.s32.totalorder %v674, 4
    %v1485 = vsel %vm1484, 1, 0
    %1486 = vset.pattern.permute.xlu0 0
    %1487 = vperm.xlu0 %1486, %v1485
    %v1488 = vpop.permute.xlu0 %1487
    %vm1489 = vcmp.eq.s32.totalorder %v1488, 1
    %v1490 = vsel %vm1489, %v1483, %v1365
    %s1491 = smul.u32 5, 4
    %s1492 = smul.addr %s1491, 8
    %s1493 = scalar_lea.vmem [#allocation2], %s1492
    %v1494 = vld [vmem:[%s1493] sm:$0xff]
    %v1495 = vld [vmem:[%s1493 + $0x8] sm:$0xff]
    %v1496 = vld [vmem:[%s1493 + $0x10] sm:$0xff]
    %v1497 = vld [vmem:[%s1493 + $0x18] sm:$0xff]
    %v1498 = vpack.c.bf16 %v1483, %v1483
    %1499 = vmatprep.subr.bf16.mxu0 %v811
    %1500 = vmatpush1.bf16.msra.mxu0 %v810
    %1501 = vmatprep.subr.bf16.mxu0 %v815
    %1502 = vmatpush1.bf16.msra.mxu0 %v814
    %1503 = vmatprep.subr.bf16.mxu0 %v819
    %1504 = vmatpush1.bf16.msra.mxu0 %v818
    %1505 = vmatprep.subr.bf16.mxu0 %v823
    %1506 = vmatpush1.bf16.msra.mxu0 %v822
    %1507 = vmatprep.subr.bf16.mxu0 %v827
    %1508 = vmatpush1.bf16.msra.mxu0 %v826
    %1509 = vmatprep.subr.bf16.mxu0 %v831
    %1510 = vmatpush1.bf16.msra.mxu0 %v830
    %1511 = vmatprep.subr.bf16.mxu0 %v835
    %1512 = vmatpush1.bf16.msra.mxu0 %v834
    %1513 = vmatprep.subr.bf16.mxu0 %v839
    %1514 = vmatpush1.bf16.msra.mxu0 %v838
    %1515 = vmatprep.subr.bf16.mxu0 0
    %1516 = vmatpush1.bf16.msra.mxu0 0
    %1517 = vmatprep.subr.bf16.mxu0 0
    %1518 = vmatpush1.bf16.msra.mxu0 0
    %1519 = vmatprep.subr.bf16.mxu0 0
    %1520 = vmatpush1.bf16.msra.mxu0 0
    %1521 = vmatprep.subr.bf16.mxu0 0
    %1522 = vmatpush1.bf16.msra.mxu0 0
    %1523 = vmatprep.subr.bf16.mxu0 0
    %1524 = vmatpush1.bf16.msra.mxu0 0
    %1525 = vmatprep.subr.bf16.mxu0 0
    %1526 = vmatpush1.bf16.msra.mxu0 0
    %1527 = vmatprep.subr.bf16.mxu0 0
    %1528 = vmatpush1.bf16.msra.mxu0 0
    %1529 = vmatprep.subr.bf16.mxu0 0
    %1530 = vmatpush1.bf16.msra.mxu0 0
    %1531 = vmatprep.mubr.bf16.mxu0 0
    %1532 = vmatmul.mubr.bf16.gmra.mrb[0].mxu0 %v1498
    %v1533 = vpop.f32.mrb[0].mxu0
    %v1534 = vadd.f32 0.0, %v1533
    %v1535 = vpop.f32.mrb[0].mxu0
    %v1536 = vadd.f32 0.0, %v1535
    %v1537 = vpop.f32.mrb[0].mxu0
    %v1538 = vpop.f32.mrb[0].mxu0
    %1539 = vdwg.mxu0
    %1540 = vmatprep.subr.bf16.mxu0 %v813
    %1541 = vmatpush1.bf16.msra.mxu0 %v812
    %1542 = vmatprep.subr.bf16.mxu0 %v817
    %1543 = vmatpush1.bf16.msra.mxu0 %v816
    %1544 = vmatprep.subr.bf16.mxu0 %v821
    %1545 = vmatpush1.bf16.msra.mxu0 %v820
    %1546 = vmatprep.subr.bf16.mxu0 %v825
    %1547 = vmatpush1.bf16.msra.mxu0 %v824
    %1548 = vmatprep.subr.bf16.mxu0 %v829
    %1549 = vmatpush1.bf16.msra.mxu0 %v828
    %1550 = vmatprep.subr.bf16.mxu0 %v833
    %1551 = vmatpush1.bf16.msra.mxu0 %v832
    %1552 = vmatprep.subr.bf16.mxu0 %v837
    %1553 = vmatpush1.bf16.msra.mxu0 %v836
    %1554 = vmatprep.subr.bf16.mxu0 %v841
    %1555 = vmatpush1.bf16.msra.mxu0 %v840
    %1556 = vmatprep.subr.bf16.mxu0 0
    %1557 = vmatpush1.bf16.msra.mxu0 0
    %1558 = vmatprep.subr.bf16.mxu0 0
    %1559 = vmatpush1.bf16.msra.mxu0 0
    %1560 = vmatprep.subr.bf16.mxu0 0
    %1561 = vmatpush1.bf16.msra.mxu0 0
    %1562 = vmatprep.subr.bf16.mxu0 0
    %1563 = vmatpush1.bf16.msra.mxu0 0
    %1564 = vmatprep.subr.bf16.mxu0 0
    %1565 = vmatpush1.bf16.msra.mxu0 0
    %1566 = vmatprep.subr.bf16.mxu0 0
    %1567 = vmatpush1.bf16.msra.mxu0 0
    %1568 = vmatprep.subr.bf16.mxu0 0
    %1569 = vmatpush1.bf16.msra.mxu0 0
    %1570 = vmatprep.subr.bf16.mxu0 0
    %1571 = vmatpush1.bf16.msra.mxu0 0
    %1572 = vmatprep.mubr.bf16.mxu0 0
    %1573 = vmatmul.mubr.bf16.gmra.mrb[0].mxu0 %v1498
    %v1574 = vpop.f32.mrb[0].mxu0
    %v1575 = vadd.f32 0.0, %v1574
    %v1576 = vpop.f32.mrb[0].mxu0
    %v1577 = vadd.f32 0.0, %v1576
    %v1578 = vpop.f32.mrb[0].mxu0
    %v1579 = vpop.f32.mrb[0].mxu0
    %1580 = vdwg.mxu0
    %v1581 = vadd.f32 %v1494, %v1534
    %v1582 = vadd.f32 %v1495, %v1536
    %v1583 = vadd.f32 %v1496, %v1575
    %v1584 = vadd.f32 %v1497, %v1577
    %v1585 = vxor.u32 %v1581, 2147483648
    %v1586 = vxor.u32 %v1582, 2147483648
    %v1587 = vxor.u32 %v1583, 2147483648
    %v1588 = vmul.f32 %v1585, 1.442695
    %v1589 = vpow.pop %v1588
    %v1590 = vmul.f32 %v1586, 1.442695
    %v1591 = vpow.pop %v1590
    %v1592 = vmul.f32 %v1587, 1.442695
    %v1593 = vpow.pop %v1592
    %v1594 = vadd.f32 %v1589, 1.0
    %v1595 = vadd.f32 %v1591, 1.0
    %v1596 = vadd.f32 %v1593, 1.0
    %v1597 = vrcp.pop %v1594
    %v1598 = vmul.f32 1.0, %v1597
    %v1599 = vrcp.pop %v1595
    %v1600 = vmul.f32 1.0, %v1599
    %v1601 = vrcp.pop %v1596
    %v1602 = vmul.f32 1.0, %v1601
    %v1603 = vtanh.pop %v1584
    %v1604 = vmul.f32 %v1600, %v1481
    %v1605 = vmul.f32 %v1598, %v1603
    %v1606 = vadd.f32 %v1604, %v1605
    %v1607 = vtanh.pop %v1606
    %v1608 = vmul.f32 %v1602, %v1607
    %vm1609 = vcmp.eq.s32.totalorder %v674, 5
    %v1610 = vsel %vm1609, 1, 0
    %1611 = vset.pattern.permute.xlu0 0
    %1612 = vperm.xlu0 %1611, %v1610
    %v1613 = vpop.permute.xlu0 %1612
    %vm1614 = vcmp.eq.s32.totalorder %v1613, 1
    %v1615 = vsel %vm1614, %v1608, %v1490
    %s1616 = smul.u32 6, 4
    %s1617 = smul.addr %s1616, 8
    %s1618 = scalar_lea.vmem [#allocation2], %s1617
    %v1619 = vld [vmem:[%s1618] sm:$0xff]
    %v1620 = vld [vmem:[%s1618 + $0x8] sm:$0xff]
    %v1621 = vld [vmem:[%s1618 + $0x10] sm:$0xff]
    %v1622 = vld [vmem:[%s1618 + $0x18] sm:$0xff]
    %v1623 = vpack.c.bf16 %v1608, %v1608
    %1624 = vmatprep.subr.bf16.mxu0 %v811
    %1625 = vmatpush1.bf16.msra.mxu0 %v810
    %1626 = vmatprep.subr.bf16.mxu0 %v815
    %1627 = vmatpush1.bf16.msra.mxu0 %v814
    %1628 = vmatprep.subr.bf16.mxu0 %v819
    %1629 = vmatpush1.bf16.msra.mxu0 %v818
    %1630 = vmatprep.subr.bf16.mxu0 %v823
    %1631 = vmatpush1.bf16.msra.mxu0 %v822
    %1632 = vmatprep.subr.bf16.mxu0 %v827
    %1633 = vmatpush1.bf16.msra.mxu0 %v826
    %1634 = vmatprep.subr.bf16.mxu0 %v831
    %1635 = vmatpush1.bf16.msra.mxu0 %v830
    %1636 = vmatprep.subr.bf16.mxu0 %v835
    %1637 = vmatpush1.bf16.msra.mxu0 %v834
    %1638 = vmatprep.subr.bf16.mxu0 %v839
    %1639 = vmatpush1.bf16.msra.mxu0 %v838
    %1640 = vmatprep.subr.bf16.mxu0 0
    %1641 = vmatpush1.bf16.msra.mxu0 0
    %1642 = vmatprep.subr.bf16.mxu0 0
    %1643 = vmatpush1.bf16.msra.mxu0 0
    %1644 = vmatprep.subr.bf16.mxu0 0
    %1645 = vmatpush1.bf16.msra.mxu0 0
    %1646 = vmatprep.subr.bf16.mxu0 0
    %1647 = vmatpush1.bf16.msra.mxu0 0
    %1648 = vmatprep.subr.bf16.mxu0 0
    %1649 = vmatpush1.bf16.msra.mxu0 0
    %1650 = vmatprep.subr.bf16.mxu0 0
    %1651 = vmatpush1.bf16.msra.mxu0 0
    %1652 = vmatprep.subr.bf16.mxu0 0
    %1653 = vmatpush1.bf16.msra.mxu0 0
    %1654 = vmatprep.subr.bf16.mxu0 0
    %1655 = vmatpush1.bf16.msra.mxu0 0
    %1656 = vmatprep.mubr.bf16.mxu0 0
    %1657 = vmatmul.mubr.bf16.gmra.mrb[0].mxu0 %v1623
    %v1658 = vpop.f32.mrb[0].mxu0
    %v1659 = vadd.f32 0.0, %v1658
    %v1660 = vpop.f32.mrb[0].mxu0
    %v1661 = vadd.f32 0.0, %v1660
    %v1662 = vpop.f32.mrb[0].mxu0
    %v1663 = vpop.f32.mrb[0].mxu0
    %1664 = vdwg.mxu0
    %1665 = vmatprep.subr.bf16.mxu0 %v813
    %1666 = vmatpush1.bf16.msra.mxu0 %v812
    %1667 = vmatprep.subr.bf16.mxu0 %v817
    %1668 = vmatpush1.bf16.msra.mxu0 %v816
    %1669 = vmatprep.subr.bf16.mxu0 %v821
    %1670 = vmatpush1.bf16.msra.mxu0 %v820
    %1671 = vmatprep.subr.bf16.mxu0 %v825
    %1672 = vmatpush1.bf16.msra.mxu0 %v824
    %1673 = vmatprep.subr.bf16.mxu0 %v829
    %1674 = vmatpush1.bf16.msra.mxu0 %v828
    %1675 = vmatprep.subr.bf16.mxu0 %v833
    %1676 = vmatpush1.bf16.msra.mxu0 %v832
    %1677 = vmatprep.subr.bf16.mxu0 %v837
    %1678 = vmatpush1.bf16.msra.mxu0 %v836
    %1679 = vmatprep.subr.bf16.mxu0 %v841
    %1680 = vmatpush1.bf16.msra.mxu0 %v840
    %1681 = vmatprep.subr.bf16.mxu0 0
    %1682 = vmatpush1.bf16.msra.mxu0 0
    %1683 = vmatprep.subr.bf16.mxu0 0
    %1684 = vmatpush1.bf16.msra.mxu0 0
    %1685 = vmatprep.subr.bf16.mxu0 0
    %1686 = vmatpush1.bf16.msra.mxu0 0
    %1687 = vmatprep.subr.bf16.mxu0 0
    %1688 = vmatpush1.bf16.msra.mxu0 0
    %1689 = vmatprep.subr.bf16.mxu0 0
    %1690 = vmatpush1.bf16.msra.mxu0 0
    %1691 = vmatprep.subr.bf16.mxu0 0
    %1692 = vmatpush1.bf16.msra.mxu0 0
    %1693 = vmatprep.subr.bf16.mxu0 0
    %1694 = vmatpush1.bf16.msra.mxu0 0
    %1695 = vmatprep.subr.bf16.mxu0 0
    %1696 = vmatpush1.bf16.msra.mxu0 0
    %1697 = vmatprep.mubr.bf16.mxu0 0
    %1698 = vmatmul.mubr.bf16.gmra.mrb[0].mxu0 %v1623
    %v1699 = vpop.f32.mrb[0].mxu0
    %v1700 = vadd.f32 0.0, %v1699
    %v1701 = vpop.f32.mrb[0].mxu0
    %v1702 = vadd.f32 0.0, %v1701
    %v1703 = vpop.f32.mrb[0].mxu0
    %v1704 = vpop.f32.mrb[0].mxu0
    %1705 = vdwg.mxu0
    %v1706 = vadd.f32 %v1619, %v1659
    %v1707 = vadd.f32 %v1620, %v1661
    %v1708 = vadd.f32 %v1621, %v1700
    %v1709 = vadd.f32 %v1622, %v1702
    %v1710 = vxor.u32 %v1706, 2147483648
    %v1711 = vxor.u32 %v1707, 2147483648
    %v1712 = vxor.u32 %v1708, 2147483648
    %v1713 = vmul.f32 %v1710, 1.442695
    %v1714 = vpow.pop %v1713
    %v1715 = vmul.f32 %v1711, 1.442695
    %v1716 = vpow.pop %v1715
    %v1717 = vmul.f32 %v1712, 1.442695
    %v1718 = vpow.pop %v1717
    %v1719 = vadd.f32 %v1714, 1.0
    %v1720 = vadd.f32 %v1716, 1.0
    %v1721 = vadd.f32 %v1718, 1.0
    %v1722 = vrcp.pop %v1719
    %v1723 = vmul.f32 1.0, %v1722
    %v1724 = vrcp.pop %v1720
    %v1725 = vmul.f32 1.0, %v1724
    %v1726 = vrcp.pop %v1721
    %v1727 = vmul.f32 1.0, %v1726
    %v1728 = vtanh.pop %v1709
    %v1729 = vmul.f32 %v1725, %v1606
    %v1730 = vmul.f32 %v1723, %v1728
    %v1731 = vadd.f32 %v1729, %v1730
    %v1732 = vtanh.pop %v1731
    %v1733 = vmul.f32 %v1727, %v1732
    %vm1734 = vcmp.eq.s32.totalorder %v674, 6
    %v1735 = vsel %vm1734, 1, 0
    %1736 = vset.pattern.permute.xlu0 0
    %1737 = vperm.xlu0 %1736, %v1735
    %v1738 = vpop.permute.xlu0 %1737
    %vm1739 = vcmp.eq.s32.totalorder %v1738, 1
    %v1740 = vsel %vm1739, %v1733, %v1615
    %s1741 = smul.u32 7, 4
    %s1742 = smul.addr %s1741, 8
    %s1743 = scalar_lea.vmem [#allocation2], %s1742
    %v1744 = vld [vmem:[%s1743] sm:$0xff]
    %v1745 = vld [vmem:[%s1743 + $0x8] sm:$0xff]
    %v1746 = vld [vmem:[%s1743 + $0x10] sm:$0xff]
    %v1747 = vld [vmem:[%s1743 + $0x18] sm:$0xff]
    %v1748 = vpack.c.bf16 %v1733, %v1733
    %1749 = vmatprep.subr.bf16.mxu0 %v811
    %1750 = vmatpush1.bf16.msra.mxu0 %v810
    %1751 = vmatprep.subr.bf16.mxu0 %v815
    %1752 = vmatpush1.bf16.msra.mxu0 %v814
    %1753 = vmatprep.subr.bf16.mxu0 %v819
    %1754 = vmatpush1.bf16.msra.mxu0 %v818
    %1755 = vmatprep.subr.bf16.mxu0 %v823
    %1756 = vmatpush1.bf16.msra.mxu0 %v822
    %1757 = vmatprep.subr.bf16.mxu0 %v827
    %1758 = vmatpush1.bf16.msra.mxu0 %v826
    %1759 = vmatprep.subr.bf16.mxu0 %v831
    %1760 = vmatpush1.bf16.msra.mxu0 %v830
    %1761 = vmatprep.subr.bf16.mxu0 %v835
    %1762 = vmatpush1.bf16.msra.mxu0 %v834
    %1763 = vmatprep.subr.bf16.mxu0 %v839
    %1764 = vmatpush1.bf16.msra.mxu0 %v838
    %1765 = vmatprep.subr.bf16.mxu0 0
    %1766 = vmatpush1.bf16.msra.mxu0 0
    %1767 = vmatprep.subr.bf16.mxu0 0
    %1768 = vmatpush1.bf16.msra.mxu0 0
    %1769 = vmatprep.subr.bf16.mxu0 0
    %1770 = vmatpush1.bf16.msra.mxu0 0
    %1771 = vmatprep.subr.bf16.mxu0 0
    %1772 = vmatpush1.bf16.msra.mxu0 0
    %1773 = vmatprep.subr.bf16.mxu0 0
    %1774 = vmatpush1.bf16.msra.mxu0 0
    %1775 = vmatprep.subr.bf16.mxu0 0
    %1776 = vmatpush1.bf16.msra.mxu0 0
    %1777 = vmatprep.subr.bf16.mxu0 0
    %1778 = vmatpush1.bf16.msra.mxu0 0
    %1779 = vmatprep.subr.bf16.mxu0 0
    %1780 = vmatpush1.bf16.msra.mxu0 0
    %1781 = vmatprep.mubr.bf16.mxu0 0
    %1782 = vmatmul.mubr.bf16.gmra.mrb[0].mxu0 %v1748
    %v1783 = vpop.f32.mrb[0].mxu0
    %v1784 = vadd.f32 0.0, %v1783
    %v1785 = vpop.f32.mrb[0].mxu0
    %v1786 = vadd.f32 0.0, %v1785
    %v1787 = vpop.f32.mrb[0].mxu0
    %v1788 = vpop.f32.mrb[0].mxu0
    %1789 = vdwg.mxu0
    %1790 = vmatprep.subr.bf16.mxu0 %v813
    %1791 = vmatpush1.bf16.msra.mxu0 %v812
    %1792 = vmatprep.subr.bf16.mxu0 %v817
    %1793 = vmatpush1.bf16.msra.mxu0 %v816
    %1794 = vmatprep.subr.bf16.mxu0 %v821
    %1795 = vmatpush1.bf16.msra.mxu0 %v820
    %1796 = vmatprep.subr.bf16.mxu0 %v825
    %1797 = vmatpush1.bf16.msra.mxu0 %v824
    %1798 = vmatprep.subr.bf16.mxu0 %v829
    %1799 = vmatpush1.bf16.msra.mxu0 %v828
    %1800 = vmatprep.subr.bf16.mxu0 %v833
    %1801 = vmatpush1.bf16.msra.mxu0 %v832
    %1802 = vmatprep.subr.bf16.mxu0 %v837
    %1803 = vmatpush1.bf16.msra.mxu0 %v836
    %1804 = vmatprep.subr.bf16.mxu0 %v841
    %1805 = vmatpush1.bf16.msra.mxu0 %v840
    %1806 = vmatprep.subr.bf16.mxu0 0
    %1807 = vmatpush1.bf16.msra.mxu0 0
    %1808 = vmatprep.subr.bf16.mxu0 0
    %1809 = vmatpush1.bf16.msra.mxu0 0
    %1810 = vmatprep.subr.bf16.mxu0 0
    %1811 = vmatpush1.bf16.msra.mxu0 0
    %1812 = vmatprep.subr.bf16.mxu0 0
    %1813 = vmatpush1.bf16.msra.mxu0 0
    %1814 = vmatprep.subr.bf16.mxu0 0
    %1815 = vmatpush1.bf16.msra.mxu0 0
    %1816 = vmatprep.subr.bf16.mxu0 0
    %1817 = vmatpush1.bf16.msra.mxu0 0
    %1818 = vmatprep.subr.bf16.mxu0 0
    %1819 = vmatpush1.bf16.msra.mxu0 0
    %1820 = vmatprep.subr.bf16.mxu0 0
    %1821 = vmatpush1.bf16.msra.mxu0 0
    %1822 = vmatprep.mubr.bf16.mxu0 0
    %1823 = vmatmul.mubr.bf16.gmra.mrb[0].mxu0 %v1748
    %v1824 = vpop.f32.mrb[0].mxu0
    %v1825 = vadd.f32 0.0, %v1824
    %v1826 = vpop.f32.mrb[0].mxu0
    %v1827 = vadd.f32 0.0, %v1826
    %v1828 = vpop.f32.mrb[0].mxu0
    %v1829 = vpop.f32.mrb[0].mxu0
    %1830 = vdwg.mxu0
    %v1831 = vadd.f32 %v1744, %v1784
    %v1832 = vadd.f32 %v1745, %v1786
    %v1833 = vadd.f32 %v1746, %v1825
    %v1834 = vadd.f32 %v1747, %v1827
    %v1835 = vxor.u32 %v1831, 2147483648
    %v1836 = vxor.u32 %v1832, 2147483648
    %v1837 = vxor.u32 %v1833, 2147483648
    %v1838 = vmul.f32 %v1835, 1.442695
    %v1839 = vpow.pop %v1838
    %v1840 = vmul.f32 %v1836, 1.442695
    %v1841 = vpow.pop %v1840
    %v1842 = vmul.f32 %v1837, 1.442695
    %v1843 = vpow.pop %v1842
    %v1844 = vadd.f32 %v1839, 1.0
    %v1845 = vadd.f32 %v1841, 1.0
    %v1846 = vadd.f32 %v1843, 1.0
    %v1847 = vrcp.pop %v1844
    %v1848 = vmul.f32 1.0, %v1847
    %v1849 = vrcp.pop %v1845
    %v1850 = vmul.f32 1.0, %v1849
    %v1851 = vrcp.pop %v1846
    %v1852 = vmul.f32 1.0, %v1851
    %v1853 = vtanh.pop %v1834
    %v1854 = vmul.f32 %v1850, %v1731
    %v1855 = vmul.f32 %v1848, %v1853
    %v1856 = vadd.f32 %v1854, %v1855
    %v1857 = vtanh.pop %v1856
    %v1858 = vmul.f32 %v1852, %v1857
    %vm1859 = vcmp.eq.s32.totalorder %v674, 7
    %v1860 = vsel %vm1859, 1, 0
    %1861 = vset.pattern.permute.xlu0 0
    %1862 = vperm.xlu0 %1861, %v1860
    %v1863 = vpop.permute.xlu0 %1862
    %vm1864 = vcmp.eq.s32.totalorder %v1863, 1
    %v1865 = vsel %vm1864, %v1858, %v1740
    %v1866 = vpack.c.bf16 %v1865, %v1865
    %v1867 = vld [vmem:[%s8] sm:$0xf]
    %v1868 = vld [vmem:[%s8 + $0x4] sm:$0xf]
    %v1869 = vld [vmem:[%s8 + $0x8] sm:$0xf]
    %v1870 = vld [vmem:[%s8 + $0xc] sm:$0xf]
    %v1871 = vld [vmem:[%s8 + $0x10] sm:$0xf]
    %v1872 = vld [vmem:[%s8 + $0x14] sm:$0xf]
    %v1873 = vld [vmem:[%s8 + $0x18] sm:$0xf]
    %v1874 = vld [vmem:[%s8 + $0x1c] sm:$0xf]
    %v1875 = vld [vmem:[%s8 + $0x20] sm:$0xf]
    %v1876 = vld [vmem:[%s8 + $0x24] sm:$0xf]
    %v1877 = vld [vmem:[%s8 + $0x28] sm:$0xf]
    %v1878 = vld [vmem:[%s8 + $0x2c] sm:$0xf]
    %v1879 = vld [vmem:[%s8 + $0x30] sm:$0xf]
    %v1880 = vld [vmem:[%s8 + $0x34] sm:$0xf]
    %v1881 = vld [vmem:[%s8 + $0x38] sm:$0xf]
    %v1882 = vld [vmem:[%s8 + $0x3c] sm:$0xf]
    %v1883 = vld [vmem:[%s9] sm:$0x1]
    %v1885 = vlaneseq
    %v1886 = vshrl.u32 %v1885, 7
    %v1887 = vsub.s32 0, %v1886
    %v1888 = vrot.slane %v1883, %v1887
    %v1906 = vunpack.c.l.b16 %v1867
    %v1907 = vunpack.c.l.b16 %v1868
    %v1908 = vunpack.c.l.b16 %v1869
    %v1909 = vunpack.c.l.b16 %v1870
    %v1910 = vunpack.c.l.b16 %v1871
    %v1911 = vunpack.c.l.b16 %v1872
    %v1912 = vunpack.c.l.b16 %v1873
    %v1913 = vunpack.c.l.b16 %v1874
    %v1914 = vunpack.c.l.b16 %v1875
    %v1915 = vunpack.c.l.b16 %v1876
    %v1916 = vunpack.c.l.b16 %v1877
    %v1917 = vunpack.c.l.b16 %v1878
    %v1918 = vunpack.c.l.b16 %v1879
    %v1919 = vunpack.c.l.b16 %v1880
    %v1920 = vunpack.c.l.b16 %v1881
    %v1921 = vunpack.c.l.b16 %v1882
    %v1922 = vpack.c.b16 %v1907, %v1906
    %v1923 = vpack.c.b16 %v1909, %v1908
    %v1924 = vpack.c.b16 %v1911, %v1910
    %v1925 = vpack.c.b16 %v1913, %v1912
    %v1926 = vpack.c.b16 %v1915, %v1914
    %v1927 = vpack.c.b16 %v1917, %v1916
    %v1928 = vpack.c.b16 %v1919, %v1918
    %v1929 = vpack.c.b16 %v1921, %v1920
    %1938 = vmatprep.subr.bf16.mxu0 0
    %1939 = vmatpush1.bf16.msra.mxu0 %v1922
    %1940 = vmatprep.subr.bf16.mxu0 0
    %1941 = vmatpush1.bf16.msra.mxu0 %v1923
    %1942 = vmatprep.subr.bf16.mxu0 0
    %1943 = vmatpush1.bf16.msra.mxu0 %v1924
    %1944 = vmatprep.subr.bf16.mxu0 0
    %1945 = vmatpush1.bf16.msra.mxu0 %v1925
    %1946 = vmatprep.subr.bf16.mxu0 0
    %1947 = vmatpush1.bf16.msra.mxu0 %v1926
    %1948 = vmatprep.subr.bf16.mxu0 0
    %1949 = vmatpush1.bf16.msra.mxu0 %v1927
    %1950 = vmatprep.subr.bf16.mxu0 0
    %1951 = vmatpush1.bf16.msra.mxu0 %v1928
    %1952 = vmatprep.subr.bf16.mxu0 0
    %1953 = vmatpush1.bf16.msra.mxu0 %v1929
    %1954 = vmatprep.subr.bf16.mxu0 0
    %1955 = vmatpush1.bf16.msra.mxu0 0
    %1956 = vmatprep.subr.bf16.mxu0 0
    %1957 = vmatpush1.bf16.msra.mxu0 0
    %1958 = vmatprep.subr.bf16.mxu0 0
    %1959 = vmatpush1.bf16.msra.mxu0 0
    %1960 = vmatprep.subr.bf16.mxu0 0
    %1961 = vmatpush1.bf16.msra.mxu0 0
    %1962 = vmatprep.subr.bf16.mxu0 0
    %1963 = vmatpush1.bf16.msra.mxu0 0
    %1964 = vmatprep.subr.bf16.mxu0 0
    %1965 = vmatpush1.bf16.msra.mxu0 0
    %1966 = vmatprep.subr.bf16.mxu0 0
    %1967 = vmatpush1.bf16.msra.mxu0 0
    %1968 = vmatprep.subr.bf16.mxu0 0
    %1969 = vmatpush1.bf16.msra.mxu0 0
    %1970 = vmatprep.mubr.bf16.mxu0 0
    %1971 = vmatmul.mubr.bf16.gmra.mrb[0].mxu0 %v1866
    %v1972 = vpop.f32.mrb[0].mxu0
    %v1973 = vadd.f32 %v1888, %v1972
    %v1974 = vpop.f32.mrb[0].mxu0
    %v1975 = vpop.f32.mrb[0].mxu0
    %v1976 = vpop.f32.mrb[0].mxu0
    %1977 = vdwg.mxu0
    %v1978 = vmax.f32 %v1973, 0.0
    %v1979 = vld [vmem:[#allocation3] sm:$0xff]
    %v1980 = vpack.c.bf16 %v1979, %v1979
    %v1981 = vld [vmem:[#allocation12] sm:$0xf]
    %v1982 = vld [vmem:[#allocation14] sm:$0x1]
    %v1984 = vlaneseq
    %v1985 = vshrl.u32 %v1984, 7
    %v1986 = vsub.s32 0, %v1985
    %v1987 = vrot.slane %v1982, %v1986
    %v1990 = vsel %vm188, %v1980, 0
    %v1993 = vsel %vm201, %v1981, 0
    %1995 = vmatprep.subr.bf16.mxu0 0
    %1996 = vmatpush1.bf16.msra.mxu0 %v1993
    %1997 = vmatprep.subr.bf16.mxu0 0
    %1998 = vmatpush1.bf16.msra.mxu0 0
    %1999 = vmatprep.subr.bf16.mxu0 0
    %2000 = vmatpush1.bf16.msra.mxu0 0
    %2001 = vmatprep.subr.bf16.mxu0 0
    %2002 = vmatpush1.bf16.msra.mxu0 0
    %2003 = vmatprep.subr.bf16.mxu0 0
    %2004 = vmatpush1.bf16.msra.mxu0 0
    %2005 = vmatprep.subr.bf16.mxu0 0
    %2006 = vmatpush1.bf16.msra.mxu0 0
    %2007 = vmatprep.subr.bf16.mxu0 0
    %2008 = vmatpush1.bf16.msra.mxu0 0
    %2009 = vmatprep.subr.bf16.mxu0 0
    %2010 = vmatpush1.bf16.msra.mxu0 0
    %2011 = vmatprep.subr.bf16.mxu0 0
    %2012 = vmatpush1.bf16.msra.mxu0 0
    %2013 = vmatprep.subr.bf16.mxu0 0
    %2014 = vmatpush1.bf16.msra.mxu0 0
    %2015 = vmatprep.subr.bf16.mxu0 0
    %2016 = vmatpush1.bf16.msra.mxu0 0
    %2017 = vmatprep.subr.bf16.mxu0 0
    %2018 = vmatpush1.bf16.msra.mxu0 0
    %2019 = vmatprep.subr.bf16.mxu0 0
    %2020 = vmatpush1.bf16.msra.mxu0 0
    %2021 = vmatprep.subr.bf16.mxu0 0
    %2022 = vmatpush1.bf16.msra.mxu0 0
    %2023 = vmatprep.subr.bf16.mxu0 0
    %2024 = vmatpush1.bf16.msra.mxu0 0
    %2025 = vmatprep.subr.bf16.mxu0 0
    %2026 = vmatpush1.bf16.msra.mxu0 0
    %2027 = vmatprep.mubr.bf16.mxu0 0
    %2028 = vmatmul.mubr.bf16.gmra.mrb[0].mxu0 %v1990
    %v2029 = vpop.f32.mrb[0].mxu0
    %v2030 = vadd.f32 %v1987, %v2029
    %v2031 = vpop.f32.mrb[0].mxu0
    %v2032 = vpop.f32.mrb[0].mxu0
    %v2033 = vpop.f32.mrb[0].mxu0
    %2034 = vdwg.mxu0
    %v2035 = vmax.f32 %v2030, 0.0
    %v2036 = vpack.c.bf16 %v1978, %v1978
    %v2037 = vpack.c.bf16 %v2035, %v2035
    %v2038 = vld [vmem:[#allocation15] sm:$0xf]
    %v2039 = vld [vmem:[#allocation15 + $0x4] sm:$0xf]
    %v2040 = vld [vmem:[#allocation15 + $0x8] sm:$0xf]
    %v2041 = vld [vmem:[#allocation15 + $0xc] sm:$0xf]
    %v2042 = vld [vmem:[#allocation15 + $0x10] sm:$0xf]
    %v2043 = vld [vmem:[#allocation15 + $0x14] sm:$0xf]
    %v2044 = vld [vmem:[#allocation15 + $0x18] sm:$0xf]
    %v2045 = vld [vmem:[#allocation15 + $0x1c] sm:$0xf]
    %v2046 = vld [vmem:[#allocation15 + $0x20] sm:$0xf]
    %v2047 = vld [vmem:[#allocation15 + $0x24] sm:$0xf]
    %v2048 = vld [vmem:[#allocation15 + $0x28] sm:$0xf]
    %v2049 = vld [vmem:[#allocation15 + $0x2c] sm:$0xf]
    %v2050 = vld [vmem:[#allocation15 + $0x30] sm:$0xf]
    %v2051 = vld [vmem:[#allocation15 + $0x34] sm:$0xf]
    %v2052 = vld [vmem:[#allocation15 + $0x38] sm:$0xf]
    %v2053 = vld [vmem:[#allocation15 + $0x3c] sm:$0xf]
    %v2054 = vld [vmem:[#allocation15 + $0x40] sm:$0xf]
    %v2055 = vld [vmem:[#allocation15 + $0x44] sm:$0xf]
    %v2056 = vld [vmem:[#allocation15 + $0x48] sm:$0xf]
    %v2057 = vld [vmem:[#allocation15 + $0x4c] sm:$0xf]
    %v2058 = vld [vmem:[#allocation15 + $0x50] sm:$0xf]
    %v2059 = vld [vmem:[#allocation15 + $0x54] sm:$0xf]
    %v2060 = vld [vmem:[#allocation15 + $0x58] sm:$0xf]
    %v2061 = vld [vmem:[#allocation15 + $0x5c] sm:$0xf]
    %v2062 = vld [vmem:[#allocation15 + $0x60] sm:$0xf]
    %v2063 = vld [vmem:[#allocation15 + $0x64] sm:$0xf]
    %v2064 = vld [vmem:[#allocation15 + $0x68] sm:$0xf]
    %v2065 = vld [vmem:[#allocation15 + $0x6c] sm:$0xf]
    %v2066 = vld [vmem:[#allocation15 + $0x70] sm:$0xf]
    %v2067 = vld [vmem:[#allocation15 + $0x74] sm:$0xf]
    %v2068 = vld [vmem:[#allocation15 + $0x78] sm:$0xf]
    %v2069 = vld [vmem:[#allocation15 + $0x7c] sm:$0xf]
    %v2070 = vld [vmem:[#allocation17] sm:$0x1]
    %v2072 = vlaneseq
    %v2073 = vshrl.u32 %v2072, 7
    %v2074 = vsub.s32 0, %v2073
    %v2075 = vrot.slane %v2070, %v2074
    %v2109 = vunpack.c.l.b16 %v2038
    %v2110 = vunpack.c.l.b16 %v2039
    %v2111 = vunpack.c.l.b16 %v2040
    %v2112 = vunpack.c.l.b16 %v2041
    %v2113 = vunpack.c.l.b16 %v2042
    %v2114 = vunpack.c.l.b16 %v2043
    %v2115 = vunpack.c.l.b16 %v2044
    %v2116 = vunpack.c.l.b16 %v2045
    %v2117 = vunpack.c.l.b16 %v2046
    %v2118 = vunpack.c.l.b16 %v2047
    %v2119 = vunpack.c.l.b16 %v2048
    %v2120 = vunpack.c.l.b16 %v2049
    %v2121 = vunpack.c.l.b16 %v2050
    %v2122 = vunpack.c.l.b16 %v2051
    %v2123 = vunpack.c.l.b16 %v2052
    %v2124 = vunpack.c.l.b16 %v2053
    %v2125 = vunpack.c.l.b16 %v2054
    %v2126 = vunpack.c.l.b16 %v2055
    %v2127 = vunpack.c.l.b16 %v2056
    %v2128 = vunpack.c.l.b16 %v2057
    %v2129 = vunpack.c.l.b16 %v2058
    %v2130 = vunpack.c.l.b16 %v2059
    %v2131 = vunpack.c.l.b16 %v2060
    %v2132 = vunpack.c.l.b16 %v2061
    %v2133 = vunpack.c.l.b16 %v2062
    %v2134 = vunpack.c.l.b16 %v2063
    %v2135 = vunpack.c.l.b16 %v2064
    %v2136 = vunpack.c.l.b16 %v2065
    %v2137 = vunpack.c.l.b16 %v2066
    %v2138 = vunpack.c.l.b16 %v2067
    %v2139 = vunpack.c.l.b16 %v2068
    %v2140 = vunpack.c.l.b16 %v2069
    %v2141 = vpack.c.b16 %v2110, %v2109
    %v2142 = vpack.c.b16 %v2112, %v2111
    %v2143 = vpack.c.b16 %v2114, %v2113
    %v2144 = vpack.c.b16 %v2116, %v2115
    %v2145 = vpack.c.b16 %v2118, %v2117
    %v2146 = vpack.c.b16 %v2120, %v2119
    %v2147 = vpack.c.b16 %v2122, %v2121
    %v2148 = vpack.c.b16 %v2124, %v2123
    %v2149 = vpack.c.b16 %v2126, %v2125
    %v2150 = vpack.c.b16 %v2128, %v2127
    %v2151 = vpack.c.b16 %v2130, %v2129
    %v2152 = vpack.c.b16 %v2132, %v2131
    %v2153 = vpack.c.b16 %v2134, %v2133
    %v2154 = vpack.c.b16 %v2136, %v2135
    %v2155 = vpack.c.b16 %v2138, %v2137
    %v2156 = vpack.c.b16 %v2140, %v2139
    %2173 = vmatprep.subr.bf16.mxu0 0
    %2174 = vmatpush1.bf16.msra.mxu0 %v2141
    %2175 = vmatprep.subr.bf16.mxu0 0
    %2176 = vmatpush1.bf16.msra.mxu0 %v2142
    %2177 = vmatprep.subr.bf16.mxu0 0
    %2178 = vmatpush1.bf16.msra.mxu0 %v2143
    %2179 = vmatprep.subr.bf16.mxu0 0
    %2180 = vmatpush1.bf16.msra.mxu0 %v2144
    %2181 = vmatprep.subr.bf16.mxu0 0
    %2182 = vmatpush1.bf16.msra.mxu0 %v2145
    %2183 = vmatprep.subr.bf16.mxu0 0
    %2184 = vmatpush1.bf16.msra.mxu0 %v2146
    %2185 = vmatprep.subr.bf16.mxu0 0
    %2186 = vmatpush1.bf16.msra.mxu0 %v2147
    %2187 = vmatprep.subr.bf16.mxu0 0
    %2188 = vmatpush1.bf16.msra.mxu0 %v2148
    %2189 = vmatprep.subr.bf16.mxu0 0
    %2190 = vmatpush1.bf16.msra.mxu0 %v2149
    %2191 = vmatprep.subr.bf16.mxu0 0
    %2192 = vmatpush1.bf16.msra.mxu0 %v2150
    %2193 = vmatprep.subr.bf16.mxu0 0
    %2194 = vmatpush1.bf16.msra.mxu0 %v2151
    %2195 = vmatprep.subr.bf16.mxu0 0
    %2196 = vmatpush1.bf16.msra.mxu0 %v2152
    %2197 = vmatprep.subr.bf16.mxu0 0
    %2198 = vmatpush1.bf16.msra.mxu0 %v2153
    %2199 = vmatprep.subr.bf16.mxu0 0
    %2200 = vmatpush1.bf16.msra.mxu0 %v2154
    %2201 = vmatprep.subr.bf16.mxu0 0
    %2202 = vmatpush1.bf16.msra.mxu0 %v2155
    %2203 = vmatprep.subr.bf16.mxu0 0
    %2204 = vmatpush1.bf16.msra.mxu0 %v2156
    %2205 = vmatprep.mubr.bf16.mxu0 %v2037
    %2206 = vmatmul.mubr.bf16.gmra.mrb[0].mxu0 %v2036
    %v2207 = vpop.f32.mrb[0].mxu0
    %v2208 = vadd.f32 %v2075, %v2207
    %v2209 = vpop.f32.mrb[0].mxu0
    %v2210 = vpop.f32.mrb[0].mxu0
    %v2211 = vpop.f32.mrb[0].mxu0
    %2212 = vdwg.mxu0
    %v2213 = vmax.f32 %v2208, 0.0
    %v2214 = vpack.c.bf16 %v2213, %v2213
    %v2215 = vld [vmem:[%s14] sm:$0xf]
    %v2216 = vld [vmem:[%s14 + $0x4] sm:$0xf]
    %v2217 = vld [vmem:[%s14 + $0x8] sm:$0xf]
    %v2218 = vld [vmem:[%s14 + $0xc] sm:$0xf]
    %v2219 = vld [vmem:[%s14 + $0x10] sm:$0xf]
    %v2220 = vld [vmem:[%s14 + $0x14] sm:$0xf]
    %v2221 = vld [vmem:[%s14 + $0x18] sm:$0xf]
    %v2222 = vld [vmem:[%s14 + $0x1c] sm:$0xf]
    %v2223 = vld [vmem:[%s14 + $0x20] sm:$0xf]
    %v2224 = vld [vmem:[%s14 + $0x24] sm:$0xf]
    %v2225 = vld [vmem:[%s14 + $0x28] sm:$0xf]
    %v2226 = vld [vmem:[%s14 + $0x2c] sm:$0xf]
    %v2227 = vld [vmem:[%s14 + $0x30] sm:$0xf]
    %v2228 = vld [vmem:[%s14 + $0x34] sm:$0xf]
    %v2229 = vld [vmem:[%s14 + $0x38] sm:$0xf]
    %v2230 = vld [vmem:[%s14 + $0x3c] sm:$0xf]
    %v2231 = vld [vmem:[%s15] sm:$0x1]
    %v2233 = vlaneseq
    %v2234 = vshrl.u32 %v2233, 7
    %v2235 = vsub.s32 0, %v2234
    %v2236 = vrot.slane %v2231, %v2235
    %v2254 = vunpack.c.l.b16 %v2215
    %v2255 = vunpack.c.l.b16 %v2216
    %v2256 = vunpack.c.l.b16 %v2217
    %v2257 = vunpack.c.l.b16 %v2218
    %v2258 = vunpack.c.l.b16 %v2219
    %v2259 = vunpack.c.l.b16 %v2220
    %v2260 = vunpack.c.l.b16 %v2221
    %v2261 = vunpack.c.l.b16 %v2222
    %v2262 = vunpack.c.l.b16 %v2223
    %v2263 = vunpack.c.l.b16 %v2224
    %v2264 = vunpack.c.l.b16 %v2225
    %v2265 = vunpack.c.l.b16 %v2226
    %v2266 = vunpack.c.l.b16 %v2227
    %v2267 = vunpack.c.l.b16 %v2228
    %v2268 = vunpack.c.l.b16 %v2229
    %v2269 = vunpack.c.l.b16 %v2230
    %v2270 = vpack.c.b16 %v2255, %v2254
    %v2271 = vpack.c.b16 %v2257, %v2256
    %v2272 = vpack.c.b16 %v2259, %v2258
    %v2273 = vpack.c.b16 %v2261, %v2260
    %v2274 = vpack.c.b16 %v2263, %v2262
    %v2275 = vpack.c.b16 %v2265, %v2264
    %v2276 = vpack.c.b16 %v2267, %v2266
    %v2277 = vpack.c.b16 %v2269, %v2268
    %2286 = vmatprep.subr.bf16.mxu0 0
    %2287 = vmatpush1.bf16.msra.mxu0 %v2270
    %2288 = vmatprep.subr.bf16.mxu0 0
    %2289 = vmatpush1.bf16.msra.mxu0 %v2271
    %2290 = vmatprep.subr.bf16.mxu0 0
    %2291 = vmatpush1.bf16.msra.mxu0 %v2272
    %2292 = vmatprep.subr.bf16.mxu0 0
    %2293 = vmatpush1.bf16.msra.mxu0 %v2273
    %2294 = vmatprep.subr.bf16.mxu0 0
    %2295 = vmatpush1.bf16.msra.mxu0 %v2274
    %2296 = vmatprep.subr.bf16.mxu0 0
    %2297 = vmatpush1.bf16.msra.mxu0 %v2275
    %2298 = vmatprep.subr.bf16.mxu0 0
    %2299 = vmatpush1.bf16.msra.mxu0 %v2276
    %2300 = vmatprep.subr.bf16.mxu0 0
    %2301 = vmatpush1.bf16.msra.mxu0 %v2277
    %2302 = vmatprep.subr.bf16.mxu0 0
    %2303 = vmatpush1.bf16.msra.mxu0 0
    %2304 = vmatprep.subr.bf16.mxu0 0
    %2305 = vmatpush1.bf16.msra.mxu0 0
    %2306 = vmatprep.subr.bf16.mxu0 0
    %2307 = vmatpush1.bf16.msra.mxu0 0
    %2308 = vmatprep.subr.bf16.mxu0 0
    %2309 = vmatpush1.bf16.msra.mxu0 0
    %2310 = vmatprep.subr.bf16.mxu0 0
    %2311 = vmatpush1.bf16.msra.mxu0 0
    %2312 = vmatprep.subr.bf16.mxu0 0
    %2313 = vmatpush1.bf16.msra.mxu0 0
    %2314 = vmatprep.subr.bf16.mxu0 0
    %2315 = vmatpush1.bf16.msra.mxu0 0
    %2316 = vmatprep.subr.bf16.mxu0 0
    %2317 = vmatpush1.bf16.msra.mxu0 0
    %2318 = vmatprep.mubr.bf16.mxu0 0
    %2319 = vmatmul.mubr.bf16.gmra.mrb[0].mxu0 %v2214
    %v2320 = vpop.f32.mrb[0].mxu0
    %v2321 = vadd.f32 %v2236, %v2320
    %v2322 = vpop.f32.mrb[0].mxu0
    %v2323 = vpop.f32.mrb[0].mxu0
    %v2324 = vpop.f32.mrb[0].mxu0
    %2325 = vdwg.mxu0
    %v2326 = vtanh.pop %v2321
    %v2327 = vmul.f32 %v2326, 2.0
    %2328 = vst [vmem:[#allocation18] sm:$0xff] %v2327
    %2329 = vst [vmem:[#allocation19] sm:$0xff] %v1978
    // Predicated region
    $region102: #{tpu_custom_call.1} parent=1 // pred_check
      _
    $region103: #{tpu_custom_call.1} parent=1 // pred_check_branch
      %2331 = sbr.rel (0) target = $region105
    $region104: #{tpu_custom_call.1} parent=1 // pred_region
      %s2333 = ssub.s32 128, 128
      %2334 = vsyncadd [#allocation5], %s2333
      %s2336 = sshll.u32 [#allocation18], 4
      %s2337 = int_to_ptr.vmem [resolvable:$true] %s2336
      %2339 = dma.vmem_to_hbm [thread:$0]  %s2337, 128, %s16, [#allocation5]
    $region105: #{tpu_custom_call.1} parent=1 // pred_fallthru
      _
    // Predicated region
    $region106: #{tpu_custom_call.1} parent=1 // pred_check
      _
    $region107: #{tpu_custom_call.1} parent=1 // pred_check_branch
      %2341 = sbr.rel (0) target = $region109
    $region108: #{tpu_custom_call.1} parent=1 // pred_region
      %s2343 = ssub.s32 128, 128
      %2344 = vsyncadd [#allocation20], %s2343
      %s2346 = sshll.u32 [#allocation19], 4
      %s2347 = int_to_ptr.vmem [resolvable:$true] %s2346
      %2349 = dma.vmem_to_hbm [thread:$0]  %s2347, 128, %s17, [#allocation20]
    $region109: #{tpu_custom_call.1} parent=1 // pred_fallthru
      _
    // Predicated region
    $region110: #{tpu_custom_call.1} parent=1 // pred_check
      _
    $region111: #{tpu_custom_call.1} parent=1 // pred_check_branch
      %2351 = sbr.rel (0) target = $region113
    $region112: #{tpu_custom_call.1} parent=1 // pred_region
      %2352 = dma.done [#allocation5], 128
    $region113: #{tpu_custom_call.1} parent=1 // pred_fallthru
      _
    // Predicated region
    $region114: #{tpu_custom_call.1} parent=1 // pred_check
      _
    $region115: #{tpu_custom_call.1} parent=1 // pred_check_branch
      %2354 = sbr.rel (0) target = $region117
    $region116: #{tpu_custom_call.1} parent=1 // pred_region
      %2355 = dma.done [#allocation20], 128
    $region117: #{tpu_custom_call.1} parent=1 // pred_fallthru
      _
    %2356 = vsyncpa [#allocation4], 1
    %2357 = vsyncpa [#allocation7], 1
    %2358 = vsyncpa [#allocation10], 1
    %2359 = vsyncpa [#allocation13], 1
    %2360 = vsyncpa [#allocation16], 1
    %2361 = vsyncpa [#allocation5], 1
    %2362 = vsyncpa [#allocation20], 1

</llo_original>
